<compile_context>
chip_gen: v6e
topology: v6e:2x2x1
jax: 0.10.0
libtpu: 0.0.40
codegen_flags: <defaults>
</compile_context>

<pallas_src>
import jax
import jax.numpy as jnp
from jax.experimental import pallas as pl
from jax.experimental.pallas import tpu as pltpu


def _silu(v):
    # sigmoid(v) = 0.5 * (1 + tanh(v / 2)): a single EUP transcendental per element.
    return v * (0.5 * jnp.tanh(0.5 * v) + 0.5)


def _shift_right_cols(a):
    """b[:, j, :] = a[:, j-1, :] with b[:, 0, :] = 0  (the 3x3 conv's left zero-padding col)."""
    # TODO(synk): pltpu.roll(a, 1, axis=1) + a column-0 mask would move this to the XLU slot.
    zero = jnp.zeros(a.shape[:1] + (1,) + a.shape[2:], a.dtype)
    return jnp.concatenate([zero, a[:, :-1, :]], axis=1)


def v7_down_kernel(xq_ref, halo_ref, wmp_ref, bmp_ref, w1_ref, b1_ref, w3_ref, b3_ref, out_ref):
    # xq_ref  : [4, T, Wo, Cin]   parity quadrants of output rows [t*T, (t+1)*T)
    # halo_ref: [1, 2, Wo, Cin]   parity-1 quadrant rows at index t*T - 1 (zeros for t == 0)
    # out_ref : [T, Wo, 2*Co]     channels last; [:Co] = maxpool branch, [Co:] = conv branch
    _, T, Wo, Cin = xq_ref.shape
    Co = bmp_ref.shape[-1]
    M = T * Wo
    mxu_dt = w1_ref.dtype

    xq = xq_ref[...]                                   # input dtype -- no whole-block f32 upcast
    halo = halo_ref[...]                               # [1, 2, Wo, Cin]

    # ---- Branch A: MaxPool2d(2,2) (exact in the input dtype) -> 1x1 conv -> SiLU ---------
    mp = jnp.maximum(jnp.maximum(xq[0], xq[1]), jnp.maximum(xq[2], xq[3]))
    a = jnp.dot(mp.reshape(M, Cin).astype(mxu_dt), wmp_ref[...],
                preferred_element_type=jnp.float32) + bmp_ref[...]
    a = _silu(a)                                                       # [M, Co] f32

    # ---- Branch B step 1: ONE fused 1x1-conv matmul over 4 quadrants + 2 halo rows -------
    lhs1 = jnp.concatenate([xq.reshape(4 * M, Cin), halo.reshape(2 * Wo, Cin)], axis=0)
    y = jnp.dot(lhs1.astype(mxu_dt), w1_ref[...],
                preferred_element_type=jnp.float32) + b1_ref[...]
    y = _silu(y).astype(mxu_dt)        # cast once; taps/shifts/concats stay in the MXU dtype
    y_all = y[:4 * M].reshape(4, T, Wo, Co)
    # halo row of y (full-res row 2*t*T - 1): for the first row tile it is the 3x3 conv's top
    # zero padding, so mask it to exactly 0.
    halo_mask = (pl.program_id(1) > 0).astype(mxu_dt)
    h_y = (y[4 * M:] * halo_mask).reshape(2, 1, Wo, Co)

    # ---- Branch B step 2: 3x3 stride-2 pad-1 conv via packed-tap matmuls ------------------
    y00, y01 = y_all[0], y_all[1]
    y10e = jnp.concatenate([h_y[0], y_all[2]], axis=0)                 # [T+1, Wo, Co]
    y11e = jnp.concatenate([h_y[1], y_all[3]], axis=0)                 # [T+1, Wo, Co]
    z01 = _shift_right_cols(y01)                                       # col -1 == zero pad
    z11e = _shift_right_cols(y11e)

    # tap (kh, kw) = y_{p,q}[oh + dh, ow + dw]; order matches w3 packing [(kh,kw,ci), co].
    taps = (z11e[:T], y10e[:T], y11e[:T],     # kh = 0  (full-res row 2*oh - 1)
            z01,      y00,      y01,          # kh = 1  (row 2*oh)
            z11e[1:], y10e[1:], y11e[1:])     # kh = 2  (row 2*oh + 1)
    taps = [t.reshape(M, Co) for t in taps]

    if Co < 128:
        # Small channel count: K-pack all 9 taps to fill the MXU contraction dim (v5e-friendly).
        lhs3 = jnp.concatenate(taps, axis=1)                           # [M, 9*Co]
        bconv = jnp.dot(lhs3, w3_ref[...], preferred_element_type=jnp.float32)
    else:
        # Large channel count: 3 accumulating matmuls (K = 3*Co) avoid the 9*Co-wide LHS temp.
        bconv = None
        for kh in range(3):
            lhs3 = jnp.concatenate(taps[3 * kh:3 * kh + 3], axis=1)    # [M, 3*Co]
            part = jnp.dot(lhs3, w3_ref[3 * kh * Co:(3 * kh + 3) * Co, :],
                           preferred_element_type=jnp.float32)
            bconv = part if bconv is None else bconv + part
    bconv = _silu(bconv + b3_ref[...])                                 # [M, Co] f32

    # ---- Store (maxpool branch first == torch.cat dim=1 order) ----------------------------
    if Co % 128 == 0:
        # Two lane-dense stores, no concat temp / extra copy through the vst slot.
        out_ref[:, :, :Co] = a.reshape(T, Wo, Co).astype(out_ref.dtype)
        out_ref[:, :, Co:] = bconv.reshape(T, Wo, Co).astype(out_ref.dtype)
    else:
        out = jnp.concatenate([a.astype(out_ref.dtype), bconv.astype(out_ref.dtype)], axis=-1)
        out_ref[...] = out.reshape(T, Wo, 2 * Co)


def _plan_row_tile(Ho, Wo, Cin, Co, x_bytes, mxu_bytes, out_bytes, forced_T=None):
    """Pick (row_tile, vmem_limit_bytes) from a per-tile VMEM working-set estimate.

    Tiles are kept modest (~8 MiB): past the pipelining knee bigger tiles only lengthen the
    un-overlapped prologue/epilogue DMAs, and keeping nT >= 2 lets megacore (v7x) shard the
    (N, nT) grid across both TensorCores.
    """
    try:
        vmem_cap = int(pltpu.get_tpu_info().vmem_capacity_bytes)
    except Exception:
        vmem_cap = 64 * 2**20                                   # v7x-safe fallback
    f32 = 4
    n_tap_cols = 9 if Co < 128 else 3                           # packed tap-LHS width used in-kernel
    per_row = Wo * (
        Cin * (4 * x_bytes * 2                                  # xq input block (double-buffered)
               + x_bytes + mxu_bytes                            # maxpool tile + its MXU cast
               + 4 * (x_bytes + mxu_bytes))                     # fused 1x1 LHS concat + cast
        + Co * (4 * f32 + 4 * mxu_bytes                         # 1x1 output (f32) + one MXU cast
                + 4 * mxu_bytes                                 # halo / column-shift working copies
                + n_tap_cols * mxu_bytes                        # packed tap LHS
                + 2 * f32                                       # branch A / branch B f32 results
                + 2 * f32 + 2 * out_bytes * 2))                 # concat temp + out block (dbl-buf)
    fixed = ((2 * Cin * Co + 9 * Co * Co) * mxu_bytes + 3 * Co * f32) * 2 \
        + 2 * (2 * Wo * Cin * (x_bytes + mxu_bytes)) + 2 * Wo * Co * (f32 + mxu_bytes)
    budget = min(8 * 2**20, int(0.4 * vmem_cap))

    if forced_T is None:
        divisors = [d for d in range(1, Ho + 1) if Ho % d == 0]
        if Ho >= 2:
            divisors = [d for d in divisors if d <= Ho // 2]    # keep >= 2 row tiles (megacore)
        fitting = [d for d in divisors if fixed + d * per_row <= budget] or [1]
        # TODO(synk): if even T=1 exceeds the budget (huge Wo*Cin), column tiling would be needed.
        mult8 = [d for d in fitting if d % 8 == 0]
        T = max(mult8 or fitting)
    else:
        T = forced_T
    vmem_limit = int(min(0.8 * vmem_cap, max(2 * (fixed + T * per_row), 32 * 2**20)))
    return T, vmem_limit


def v7_downsampling_nhwc(x_nhwc, kernel_params, *, row_tile=None):
    """NHWC-native entry point: [N, H, W, Cin] -> [N, H//2, W//2, 2*Co] (no layout transposes)."""
    wmp, bmp, w1, b1, w3k, b3 = kernel_params
    N, H, W, Cin = x_nhwc.shape
    # TODO(synk): odd H/W (PyTorch Conv k=3,s=2,p=1 gives ceil(H/2) rows) is not supported here.
    assert H % 2 == 0 and W % 2 == 0, "V7DownSampling Pallas kernel requires even H and W"
    Ho, Wo = H // 2, W // 2
    Co = bmp.shape[-1]
    mxu_dtype = w1.dtype

    if row_tile is not None:
        assert Ho % row_tile == 0, "row_tile must divide Ho"
    x_bytes = jnp.dtype(x_nhwc.dtype).itemsize
    T, vmem_limit = _plan_row_tile(Ho, Wo, Cin, Co, x_bytes, jnp.dtype(mxu_dtype).itemsize,
                                   x_bytes, forced_T=row_tile)
    nT = Ho // T

    # stride-2 parity quadrants, channels last: xq[n, 2p+q, oh, ow, c] = x[n, 2oh+p, 2ow+q, c]
    # TODO(synk): this split (one XLA transpose = one HBM round trip of x) could also move
    # in-kernel via strided pl.ds loads of a [2T, W, Cin] row block.
    xq = x_nhwc.reshape(N, Ho, 2, Wo, 2, Cin).transpose(0, 2, 4, 1, 3, 5)
    xq = xq.reshape(N, 4, Ho, Wo, Cin)

    # Tiny per-tile halo: parity-1 quadrant rows at full-res row 2*t*T - 1 (zero row for the
    # first tile == the 3x3 conv's top zero-padding row).
    if nT > 1:
        prev = xq[:, 2:4, T - 1::T][:, :, :nT - 1]                            # [N,2,nT-1,Wo,Cin]
        halo = jnp.concatenate([jnp.zeros((N, 2, 1, Wo, Cin), xq.dtype), prev], axis=2)
    else:
        halo = jnp.zeros((N, 2, 1, Wo, Cin), xq.dtype)
    halo = jnp.transpose(halo, (0, 2, 1, 3, 4))                               # [N,nT,2,Wo,Cin]

    # TODO(synk): pipeline_mode=pl.Buffered(1) on the constant-index weight specs would save a
    # little VMEM on v7x; omitted to keep the spec portable across jax versions.
    out_nhwc = pl.pallas_call(
        v7_down_kernel,
        out_shape=jax.ShapeDtypeStruct((N, Ho, Wo, 2 * Co), x_nhwc.dtype),
        grid_spec=pltpu.PrefetchScalarGridSpec(
            num_scalar_prefetch=0,
            grid=(N, nT),
            in_specs=[
                pl.BlockSpec((None, 4, T, Wo, Cin), lambda n, t: (n, 0, t, 0, 0)),
                pl.BlockSpec((None, 1, 2, Wo, Cin), lambda n, t: (n, t, 0, 0, 0)),
                pl.BlockSpec((Cin, Co), lambda n, t: (0, 0)),
                pl.BlockSpec((1, Co), lambda n, t: (0, 0)),
                pl.BlockSpec((Cin, Co), lambda n, t: (0, 0)),
                pl.BlockSpec((1, Co), lambda n, t: (0, 0)),
                pl.BlockSpec((9 * Co, Co), lambda n, t: (0, 0)),
                pl.BlockSpec((1, Co), lambda n, t: (0, 0)),
            ],
            out_specs=pl.BlockSpec((None, T, Wo, 2 * Co), lambda n, t: (n, t, 0, 0)),
        ),
        compiler_params=pltpu.CompilerParams(
            dimension_semantics=("parallel", "parallel"),
            vmem_limit_bytes=vmem_limit),
    )(xq, halo, wmp, bmp, w1, b1, w3k, b3)
    return out_nhwc


def v7_downsampling(x_nchw, kernel_params, *, row_tile=None):
    """NCHW compatibility shim matching the PyTorch module: [N,Cin,H,W] -> [N, 2*Co, H//2, W//2].

    Prefer v7_downsampling_nhwc in channels-last networks to avoid the NCHW<->NHWC transposes.
    """
    x_nhwc = jnp.transpose(x_nchw, (0, 2, 3, 1))
    out_nhwc = v7_downsampling_nhwc(x_nhwc, kernel_params, row_tile=row_tile)
    return jnp.transpose(out_nhwc, (0, 3, 1, 2))


# ----------------------- deterministic parameter construction -----------------------
def make_params(key, inc, ouc):
    """BatchNorm (eval) folded into conv weights/bias; returns (kernel params f32, NCHW params)."""
    co = ouc // 2
    eps = 1e-3
    ks = jax.random.split(key, 6)

    def bn_params(k, c):
        k1, k2, k3, k4 = jax.random.split(k, 4)
        gamma = jax.random.uniform(k1, (c,), minval=0.5, maxval=1.5)
        beta = 0.1 * jax.random.normal(k2, (c,))
        mean = 0.1 * jax.random.normal(k3, (c,))
        var = jax.random.uniform(k4, (c,), minval=0.5, maxval=1.5)
        return gamma, beta, mean, var

    def fold(w_oihw, bn):
        gamma, beta, mean, var = bn
        scale = gamma / jnp.sqrt(var + eps)
        return w_oihw * scale[:, None, None, None], beta - mean * scale

    w_mp = jax.random.normal(ks[0], (co, inc, 1, 1), jnp.float32) / jnp.sqrt(inc)
    w_mp, b_mp = fold(w_mp, bn_params(ks[1], co))

    w_1 = jax.random.normal(ks[2], (co, inc, 1, 1), jnp.float32) / jnp.sqrt(inc)
    w_1, b_1 = fold(w_1, bn_params(ks[3], co))

    w_3 = jax.random.normal(ks[4], (co, co, 3, 3), jnp.float32) / jnp.sqrt(9 * co)
    w_3, b_3 = fold(w_3, bn_params(ks[5], co))

    kernel_params = (
        w_mp[:, :, 0, 0].T,                                     # [Cin, Co]
        b_mp.reshape(1, co),
        w_1[:, :, 0, 0].T,                                      # [Cin, Co]
        b_1.reshape(1, co),
        jnp.transpose(w_3, (2, 3, 1, 0)).reshape(9 * co, co),   # packed taps [(kh,kw,ci), co]
        b_3.reshape(1, co),
    )
    nchw_params = (w_mp, b_mp, w_1, b_1, w_3, b_3)
    return kernel_params, nchw_params


def cast_mxu_params(kernel_params, mxu_dtype):
    """Cast matmul weights (not biases) to the MXU operand dtype (bf16 on v6e/v7x)."""
    wmp, bmp, w1, b1, w3k, b3 = kernel_params
    return (wmp.astype(mxu_dtype), bmp, w1.astype(mxu_dtype), b1,
            w3k.astype(mxu_dtype), b3)


# ------------------------------ pure-JAX reference ----------------------------------
def reference_nchw(x, nchw_params):
    w_mp, b_mp, w_1, b_1, w_3, b_3 = nchw_params

    def conv(x, w, b, stride, pad):
        y = jax.lax.conv_general_dilated(
            x, w, window_strides=(stride, stride),
            padding=[(pad, pad), (pad, pad)],
            dimension_numbers=("NCHW", "OIHW", "NCHW"),
            precision=jax.lax.Precision.HIGHEST)
        return y + b[None, :, None, None]

    silu = lambda v: v * jax.nn.sigmoid(v)
    mp = jax.lax.reduce_window(x, -jnp.inf, jax.lax.max,
                               (1, 1, 2, 2), (1, 1, 2, 2), "VALID")
    a = silu(conv(mp, w_mp, b_mp, 1, 0))
    y = silu(conv(x, w_1, b_1, 1, 0))
    b = silu(conv(y, w_3, b_3, 2, 1))
    return jnp.concatenate([a, b], axis=1)


if __name__ == "__main__":
    key = jax.random.PRNGKey(0)
    kx, kp = jax.random.split(key)

    N, inc, ouc, H, W = 2, 4, 8, 16, 16
    x = jax.random.normal(kx, (N, inc, H, W), dtype=jnp.float32)
    kernel_params, nchw_params = make_params(kp, inc, ouc)
    ref = reference_nchw(x, nchw_params)

    # 1) f32 MXU path, auto row tile (planner keeps nT >= 2 -> exercises the halo path).
    out = jax.block_until_ready(v7_downsampling(x, kernel_params))
    assert out.shape == (N, ouc, H // 2, W // 2), out.shape
    err = float(jnp.max(jnp.abs(out - ref)))
    assert jnp.allclose(out, ref, rtol=2e-2, atol=2e-2), f"f32 max abs err = {err}"

    # 2) f32, forced finer row tiling (nT = 4) -- different halo/tile configuration.
    out_t = jax.block_until_ready(v7_downsampling(x, kernel_params, row_tile=2))
    err_t = float(jnp.max(jnp.abs(out_t - ref)))
    assert jnp.allclose(out_t, ref, rtol=2e-2, atol=2e-2), f"tiled f32 max abs err = {err_t}"

    # 3) bf16 MXU operands (f32 accumulation), single row tile per image -- perf-path smoke check.
    bf16_params = cast_mxu_params(kernel_params, jnp.bfloat16)
    out_bf = jax.block_until_ready(v7_downsampling(x, bf16_params, row_tile=4))
    err_bf = float(jnp.max(jnp.abs(out_bf - ref)))
    assert jnp.allclose(out_bf, ref, rtol=1e-1, atol=1e-1), f"bf16 max abs err = {err_bf}"

    print("KERNEL_OK")
</pallas_src>

<mosaic_0001>
module attributes {stable_mosaic.version = 11 : i64} {
  func.func @v7_down_kernel(%arg0: i32, %arg1: i32, %arg2: memref<1x4x4x8x4xf32, #tpu.memory_space<vmem>>, %arg3: memref<1x1x2x8x4xf32, #tpu.memory_space<vmem>>, %arg4: memref<4x4xf32, #tpu.memory_space<vmem>>, %arg5: memref<1x4xf32, #tpu.memory_space<vmem>>, %arg6: memref<4x4xf32, #tpu.memory_space<vmem>>, %arg7: memref<1x4xf32, #tpu.memory_space<vmem>>, %arg8: memref<36x4xf32, #tpu.memory_space<vmem>>, %arg9: memref<1x4xf32, #tpu.memory_space<vmem>>, %arg10: memref<1x4x8x8xf32, #tpu.memory_space<vmem>>) attributes {dimension_semantics = [#tpu.dimension_semantics<parallel>, #tpu.dimension_semantics<parallel>], iteration_bounds = array<i64: 2, 2>, scalar_prefetch = 0 : i64, scratch_operands = 0 : i64, tpu.core_type = #tpu.core_type<tc>, window_params = [{transform_indices = @transform_0, window_bounds = array<i64: 1, 4, 4, 8, 4>}, {transform_indices = @transform_1, window_bounds = array<i64: 1, 1, 2, 8, 4>}, {pipeline_mode = #tpu.pipeline_mode<synchronous>, transform_indices = @transform_2, window_bounds = array<i64: 4, 4>}, {pipeline_mode = #tpu.pipeline_mode<synchronous>, transform_indices = @transform_3, window_bounds = array<i64: 1, 4>}, {pipeline_mode = #tpu.pipeline_mode<synchronous>, transform_indices = @transform_4, window_bounds = array<i64: 4, 4>}, {pipeline_mode = #tpu.pipeline_mode<synchronous>, transform_indices = @transform_5, window_bounds = array<i64: 1, 4>}, {pipeline_mode = #tpu.pipeline_mode<synchronous>, transform_indices = @transform_6, window_bounds = array<i64: 36, 4>}, {pipeline_mode = #tpu.pipeline_mode<synchronous>, transform_indices = @transform_7, window_bounds = array<i64: 1, 4>}, {transform_indices = @transform_8, window_bounds = array<i64: 1, 4, 8, 8>}]} {
    %c0 = arith.constant 0 : index
    %c0_0 = arith.constant 0 : index
    %c0_1 = arith.constant 0 : index
    %c0_2 = arith.constant 0 : index
    %c0_3 = arith.constant 0 : index
    %0 = vector.load %arg2[%c0, %c0_0, %c0_1, %c0_2, %c0_3] : memref<1x4x4x8x4xf32, #tpu.memory_space<vmem>>, vector<1x4x4x8x4xf32>
    %1 = vector.shape_cast %0 : vector<1x4x4x8x4xf32> to vector<4x4x8x4xf32>
    %c0_4 = arith.constant 0 : index
    %c0_5 = arith.constant 0 : index
    %c0_6 = arith.constant 0 : index
    %c0_7 = arith.constant 0 : index
    %c0_8 = arith.constant 0 : index
    %2 = vector.load %arg3[%c0_4, %c0_5, %c0_6, %c0_7, %c0_8] : memref<1x1x2x8x4xf32, #tpu.memory_space<vmem>>, vector<1x1x2x8x4xf32>
    %3 = vector.shape_cast %2 : vector<1x1x2x8x4xf32> to vector<1x2x8x4xf32>
    %4 = vector.extract_strided_slice %1 {offsets = [0, 0, 0, 0], sizes = [1, 4, 8, 4], strides = [1, 1, 1, 1]} : vector<4x4x8x4xf32> to vector<1x4x8x4xf32>
    %5 = vector.shape_cast %4 : vector<1x4x8x4xf32> to vector<4x8x4xf32>
    %6 = vector.extract_strided_slice %1 {offsets = [1, 0, 0, 0], sizes = [1, 4, 8, 4], strides = [1, 1, 1, 1]} : vector<4x4x8x4xf32> to vector<1x4x8x4xf32>
    %7 = vector.shape_cast %6 : vector<1x4x8x4xf32> to vector<4x8x4xf32>
    %8 = arith.maximumf %5, %7 : vector<4x8x4xf32>
    %9 = vector.extract_strided_slice %1 {offsets = [2, 0, 0, 0], sizes = [1, 4, 8, 4], strides = [1, 1, 1, 1]} : vector<4x4x8x4xf32> to vector<1x4x8x4xf32>
    %10 = vector.shape_cast %9 : vector<1x4x8x4xf32> to vector<4x8x4xf32>
    %11 = vector.extract_strided_slice %1 {offsets = [3, 0, 0, 0], sizes = [1, 4, 8, 4], strides = [1, 1, 1, 1]} : vector<4x4x8x4xf32> to vector<1x4x8x4xf32>
    %12 = vector.shape_cast %11 : vector<1x4x8x4xf32> to vector<4x8x4xf32>
    %13 = arith.maximumf %10, %12 : vector<4x8x4xf32>
    %14 = arith.maximumf %8, %13 : vector<4x8x4xf32>
    %15 = vector.shape_cast %14 : vector<4x8x4xf32> to vector<32x4xf32>
    %c0_9 = arith.constant 0 : index
    %c0_10 = arith.constant 0 : index
    %16 = vector.load %arg4[%c0_9, %c0_10] : memref<4x4xf32, #tpu.memory_space<vmem>>, vector<4x4xf32>
    %cst = arith.constant dense<0.000000e+00> : vector<32x4xf32>
    %17 = tpu.matmul %15, %16, %cst {dimension_numbers = #tpu.dot_dimension_numbers<[1], [0], [0], [1], [0, 0, 1, 1], [], []>} : vector<32x4xf32>, vector<4x4xf32>, vector<32x4xf32> -> vector<32x4xf32>
    %c0_11 = arith.constant 0 : index
    %c0_12 = arith.constant 0 : index
    %18 = vector.load %arg5[%c0_11, %c0_12] : memref<1x4xf32, #tpu.memory_space<vmem>>, vector<1x4xf32>
    %19 = vector.broadcast %18 : vector<1x4xf32> to vector<32x4xf32>
    %20 = arith.addf %17, %19 : vector<32x4xf32>
    %cst_13 = arith.constant 5.000000e-01 : f32
    %21 = vector.broadcast %cst_13 : f32 to vector<32x4xf32>
    %22 = arith.mulf %21, %20 : vector<32x4xf32>
    %23 = math.tanh %22 : vector<32x4xf32>
    %cst_14 = arith.constant 5.000000e-01 : f32
    %24 = vector.broadcast %cst_14 : f32 to vector<32x4xf32>
    %25 = arith.mulf %24, %23 : vector<32x4xf32>
    %cst_15 = arith.constant 5.000000e-01 : f32
    %26 = vector.broadcast %cst_15 : f32 to vector<32x4xf32>
    %27 = arith.addf %25, %26 : vector<32x4xf32>
    %28 = arith.mulf %20, %27 : vector<32x4xf32>
    %29 = vector.shape_cast %1 : vector<4x4x8x4xf32> to vector<128x4xf32>
    %30 = vector.shape_cast %3 : vector<1x2x8x4xf32> to vector<16x4xf32>
    %31 = tpu.concatenate %29, %30 in 0 : vector<128x4xf32>, vector<16x4xf32> -> vector<144x4xf32>
    %c0_16 = arith.constant 0 : index
    %c0_17 = arith.constant 0 : index
    %32 = vector.load %arg6[%c0_16, %c0_17] : memref<4x4xf32, #tpu.memory_space<vmem>>, vector<4x4xf32>
    %cst_18 = arith.constant dense<0.000000e+00> : vector<144x4xf32>
    %33 = tpu.matmul %31, %32, %cst_18 {dimension_numbers = #tpu.dot_dimension_numbers<[1], [0], [0], [1], [0, 0, 1, 1], [], []>} : vector<144x4xf32>, vector<4x4xf32>, vector<144x4xf32> -> vector<144x4xf32>
    %c0_19 = arith.constant 0 : index
    %c0_20 = arith.constant 0 : index
    %34 = vector.load %arg7[%c0_19, %c0_20] : memref<1x4xf32, #tpu.memory_space<vmem>>, vector<1x4xf32>
    %35 = vector.broadcast %34 : vector<1x4xf32> to vector<144x4xf32>
    %36 = arith.addf %33, %35 : vector<144x4xf32>
    %cst_21 = arith.constant 5.000000e-01 : f32
    %37 = vector.broadcast %cst_21 : f32 to vector<144x4xf32>
    %38 = arith.mulf %37, %36 : vector<144x4xf32>
    %39 = math.tanh %38 : vector<144x4xf32>
    %cst_22 = arith.constant 5.000000e-01 : f32
    %40 = vector.broadcast %cst_22 : f32 to vector<144x4xf32>
    %41 = arith.mulf %40, %39 : vector<144x4xf32>
    %cst_23 = arith.constant 5.000000e-01 : f32
    %42 = vector.broadcast %cst_23 : f32 to vector<144x4xf32>
    %43 = arith.addf %41, %42 : vector<144x4xf32>
    %44 = arith.mulf %36, %43 : vector<144x4xf32>
    %45 = vector.extract_strided_slice %44 {offsets = [0, 0], sizes = [128, 4], strides = [1, 1]} : vector<144x4xf32> to vector<128x4xf32>
    %46 = vector.shape_cast %45 : vector<128x4xf32> to vector<4x4x8x4xf32>
    %c0_i32 = arith.constant 0 : i32
    %47 = arith.cmpi sgt, %arg1, %c0_i32 : i32
    %48 = arith.extui %47 : i1 to i32
    %49 = arith.sitofp %48 : i32 to f32
    %50 = vector.extract_strided_slice %44 {offsets = [128, 0], sizes = [16, 4], strides = [1, 1]} : vector<144x4xf32> to vector<16x4xf32>
    %51 = vector.broadcast %49 : f32 to vector<16x4xf32>
    %52 = arith.mulf %50, %51 : vector<16x4xf32>
    %53 = vector.shape_cast %52 : vector<16x4xf32> to vector<2x1x8x4xf32>
    %54 = vector.extract_strided_slice %46 {offsets = [0, 0, 0, 0], sizes = [1, 4, 8, 4], strides = [1, 1, 1, 1]} : vector<4x4x8x4xf32> to vector<1x4x8x4xf32>
    %55 = vector.shape_cast %54 : vector<1x4x8x4xf32> to vector<4x8x4xf32>
    %56 = vector.extract_strided_slice %46 {offsets = [1, 0, 0, 0], sizes = [1, 4, 8, 4], strides = [1, 1, 1, 1]} : vector<4x4x8x4xf32> to vector<1x4x8x4xf32>
    %57 = vector.shape_cast %56 : vector<1x4x8x4xf32> to vector<4x8x4xf32>
    %58 = vector.extract_strided_slice %53 {offsets = [0, 0, 0, 0], sizes = [1, 1, 8, 4], strides = [1, 1, 1, 1]} : vector<2x1x8x4xf32> to vector<1x1x8x4xf32>
    %59 = vector.shape_cast %58 : vector<1x1x8x4xf32> to vector<1x8x4xf32>
    %60 = vector.extract_strided_slice %46 {offsets = [2, 0, 0, 0], sizes = [1, 4, 8, 4], strides = [1, 1, 1, 1]} : vector<4x4x8x4xf32> to vector<1x4x8x4xf32>
    %61 = vector.shape_cast %60 : vector<1x4x8x4xf32> to vector<4x8x4xf32>
    %62 = tpu.concatenate %59, %61 in 0 : vector<1x8x4xf32>, vector<4x8x4xf32> -> vector<5x8x4xf32>
    %63 = vector.extract_strided_slice %53 {offsets = [1, 0, 0, 0], sizes = [1, 1, 8, 4], strides = [1, 1, 1, 1]} : vector<2x1x8x4xf32> to vector<1x1x8x4xf32>
    %64 = vector.shape_cast %63 : vector<1x1x8x4xf32> to vector<1x8x4xf32>
    %65 = vector.extract_strided_slice %46 {offsets = [3, 0, 0, 0], sizes = [1, 4, 8, 4], strides = [1, 1, 1, 1]} : vector<4x4x8x4xf32> to vector<1x4x8x4xf32>
    %66 = vector.shape_cast %65 : vector<1x4x8x4xf32> to vector<4x8x4xf32>
    %67 = tpu.concatenate %64, %66 in 0 : vector<1x8x4xf32>, vector<4x8x4xf32> -> vector<5x8x4xf32>
    %cst_24 = arith.constant 0.000000e+00 : f32
    %68 = vector.broadcast %cst_24 : f32 to vector<4x1x4xf32>
    %69 = vector.extract_strided_slice %57 {offsets = [0, 0, 0], sizes = [4, 7, 4], strides = [1, 1, 1]} : vector<4x8x4xf32> to vector<4x7x4xf32>
    %70 = tpu.concatenate %68, %69 in 1 : vector<4x1x4xf32>, vector<4x7x4xf32> -> vector<4x8x4xf32>
    %cst_25 = arith.constant 0.000000e+00 : f32
    %71 = vector.broadcast %cst_25 : f32 to vector<5x1x4xf32>
    %72 = vector.extract_strided_slice %67 {offsets = [0, 0, 0], sizes = [5, 7, 4], strides = [1, 1, 1]} : vector<5x8x4xf32> to vector<5x7x4xf32>
    %73 = tpu.concatenate %71, %72 in 1 : vector<5x1x4xf32>, vector<5x7x4xf32> -> vector<5x8x4xf32>
    %74 = vector.extract_strided_slice %73 {offsets = [0, 0, 0], sizes = [4, 8, 4], strides = [1, 1, 1]} : vector<5x8x4xf32> to vector<4x8x4xf32>
    %75 = vector.extract_strided_slice %62 {offsets = [0, 0, 0], sizes = [4, 8, 4], strides = [1, 1, 1]} : vector<5x8x4xf32> to vector<4x8x4xf32>
    %76 = vector.extract_strided_slice %67 {offsets = [0, 0, 0], sizes = [4, 8, 4], strides = [1, 1, 1]} : vector<5x8x4xf32> to vector<4x8x4xf32>
    %77 = vector.extract_strided_slice %73 {offsets = [1, 0, 0], sizes = [4, 8, 4], strides = [1, 1, 1]} : vector<5x8x4xf32> to vector<4x8x4xf32>
    %78 = vector.extract_strided_slice %62 {offsets = [1, 0, 0], sizes = [4, 8, 4], strides = [1, 1, 1]} : vector<5x8x4xf32> to vector<4x8x4xf32>
    %79 = vector.extract_strided_slice %67 {offsets = [1, 0, 0], sizes = [4, 8, 4], strides = [1, 1, 1]} : vector<5x8x4xf32> to vector<4x8x4xf32>
    %80 = vector.shape_cast %74 : vector<4x8x4xf32> to vector<32x4xf32>
    %81 = vector.shape_cast %75 : vector<4x8x4xf32> to vector<32x4xf32>
    %82 = vector.shape_cast %76 : vector<4x8x4xf32> to vector<32x4xf32>
    %83 = vector.shape_cast %70 : vector<4x8x4xf32> to vector<32x4xf32>
    %84 = vector.shape_cast %55 : vector<4x8x4xf32> to vector<32x4xf32>
    %85 = vector.shape_cast %57 : vector<4x8x4xf32> to vector<32x4xf32>
    %86 = vector.shape_cast %77 : vector<4x8x4xf32> to vector<32x4xf32>
    %87 = vector.shape_cast %78 : vector<4x8x4xf32> to vector<32x4xf32>
    %88 = vector.shape_cast %79 : vector<4x8x4xf32> to vector<32x4xf32>
    %89 = tpu.concatenate %80, %81, %82, %83, %84, %85, %86, %87, %88 in 1 : vector<32x4xf32>, vector<32x4xf32>, vector<32x4xf32>, vector<32x4xf32>, vector<32x4xf32>, vector<32x4xf32>, vector<32x4xf32>, vector<32x4xf32>, vector<32x4xf32> -> vector<32x36xf32>
    %c0_26 = arith.constant 0 : index
    %c0_27 = arith.constant 0 : index
    %90 = vector.load %arg8[%c0_26, %c0_27] : memref<36x4xf32, #tpu.memory_space<vmem>>, vector<36x4xf32>
    %cst_28 = arith.constant dense<0.000000e+00> : vector<32x4xf32>
    %91 = tpu.matmul %89, %90, %cst_28 {dimension_numbers = #tpu.dot_dimension_numbers<[1], [0], [0], [1], [0, 0, 1, 1], [], []>} : vector<32x36xf32>, vector<36x4xf32>, vector<32x4xf32> -> vector<32x4xf32>
    %c0_29 = arith.constant 0 : index
    %c0_30 = arith.constant 0 : index
    %92 = vector.load %arg9[%c0_29, %c0_30] : memref<1x4xf32, #tpu.memory_space<vmem>>, vector<1x4xf32>
    %93 = vector.broadcast %92 : vector<1x4xf32> to vector<32x4xf32>
    %94 = arith.addf %91, %93 : vector<32x4xf32>
    %cst_31 = arith.constant 5.000000e-01 : f32
    %95 = vector.broadcast %cst_31 : f32 to vector<32x4xf32>
    %96 = arith.mulf %95, %94 : vector<32x4xf32>
    %97 = math.tanh %96 : vector<32x4xf32>
    %cst_32 = arith.constant 5.000000e-01 : f32
    %98 = vector.broadcast %cst_32 : f32 to vector<32x4xf32>
    %99 = arith.mulf %98, %97 : vector<32x4xf32>
    %cst_33 = arith.constant 5.000000e-01 : f32
    %100 = vector.broadcast %cst_33 : f32 to vector<32x4xf32>
    %101 = arith.addf %99, %100 : vector<32x4xf32>
    %102 = arith.mulf %94, %101 : vector<32x4xf32>
    %103 = tpu.concatenate %28, %102 in 1 : vector<32x4xf32>, vector<32x4xf32> -> vector<32x8xf32>
    %104 = vector.shape_cast %103 : vector<32x8xf32> to vector<4x8x8xf32>
    %c0_34 = arith.constant 0 : index
    %c0_35 = arith.constant 0 : index
    %c0_36 = arith.constant 0 : index
    %c0_37 = arith.constant 0 : index
    %105 = vector.load %arg10[%c0_34, %c0_35, %c0_36, %c0_37] : memref<1x4x8x8xf32, #tpu.memory_space<vmem>>, vector<1x4x8x8xf32>
    %106 = vector.shape_cast %105 : vector<1x4x8x8xf32> to vector<4x8x8xf32>
    %107 = vector.shape_cast %104 : vector<4x8x8xf32> to vector<1x4x8x8xf32>
    tpu.vector_store %arg10[%c0_34, %c0_35, %c0_36, %c0_37], %107 {strides = array<i32>} : memref<1x4x8x8xf32, #tpu.memory_space<vmem>>, vector<1x4x8x8xf32>,
    return
  }
  func.func @transform_0(%arg0: i32, %arg1: i32) -> (i32, i32, i32, i32, i32) {
    %c0_i32 = arith.constant 0 : i32
    %c0_i32_0 = arith.constant 0 : i32
    %c0_i32_1 = arith.constant 0 : i32
    %c0_i32_2 = arith.constant 0 : i32
    return %arg0, %c0_i32, %arg1, %c0_i32_0, %c0_i32_1 : i32, i32, i32, i32, i32
  }
  func.func @transform_1(%arg0: i32, %arg1: i32) -> (i32, i32, i32, i32, i32) {
    %c0_i32 = arith.constant 0 : i32
    %c0_i32_0 = arith.constant 0 : i32
    %c0_i32_1 = arith.constant 0 : i32
    %c0_i32_2 = arith.constant 0 : i32
    return %arg0, %arg1, %c0_i32, %c0_i32_0, %c0_i32_1 : i32, i32, i32, i32, i32
  }
  func.func @transform_2(%arg0: i32, %arg1: i32) -> (i32, i32) {
    %c0_i32 = arith.constant 0 : i32
    %c0_i32_0 = arith.constant 0 : i32
    %c0_i32_1 = arith.constant 0 : i32
    return %c0_i32, %c0_i32_0 : i32, i32
  }
  func.func @transform_3(%arg0: i32, %arg1: i32) -> (i32, i32) {
    %c0_i32 = arith.constant 0 : i32
    %c0_i32_0 = arith.constant 0 : i32
    %c0_i32_1 = arith.constant 0 : i32
    return %c0_i32, %c0_i32_0 : i32, i32
  }
  func.func @transform_4(%arg0: i32, %arg1: i32) -> (i32, i32) {
    %c0_i32 = arith.constant 0 : i32
    %c0_i32_0 = arith.constant 0 : i32
    %c0_i32_1 = arith.constant 0 : i32
    return %c0_i32, %c0_i32_0 : i32, i32
  }
  func.func @transform_5(%arg0: i32, %arg1: i32) -> (i32, i32) {
    %c0_i32 = arith.constant 0 : i32
    %c0_i32_0 = arith.constant 0 : i32
    %c0_i32_1 = arith.constant 0 : i32
    return %c0_i32, %c0_i32_0 : i32, i32
  }
  func.func @transform_6(%arg0: i32, %arg1: i32) -> (i32, i32) {
    %c0_i32 = arith.constant 0 : i32
    %c0_i32_0 = arith.constant 0 : i32
    %c0_i32_1 = arith.constant 0 : i32
    return %c0_i32, %c0_i32_0 : i32, i32
  }
  func.func @transform_7(%arg0: i32, %arg1: i32) -> (i32, i32) {
    %c0_i32 = arith.constant 0 : i32
    %c0_i32_0 = arith.constant 0 : i32
    %c0_i32_1 = arith.constant 0 : i32
    return %c0_i32, %c0_i32_0 : i32, i32
  }
  func.func @transform_8(%arg0: i32, %arg1: i32) -> (i32, i32, i32, i32) {
    %c0_i32 = arith.constant 0 : i32
    %c0_i32_0 = arith.constant 0 : i32
    %c0_i32_1 = arith.constant 0 : i32
    return %arg0, %arg1, %c0_i32, %c0_i32_0 : i32, i32, i32, i32
  }
}

</mosaic_0001>

<llo_original>
// kernel: tpu_custom_call.1
$region0: #{tpu_custom_call.1}
  #allocation0 [shape = 'u32[]', space=smem, size = 0x4, offset = 0x4, fixed_abs, tag = 'smem constant byte address 0x4 - core index']
  #allocation1 [shape = 'u32[144,128]{1,0:T(1,128)}', space=vmem, size = 0x12000, scoped, tag = 'internal scratch']
  %s0 = inlined_call_operand.vmem [shape: f32[2,4,8,8,4], index: 0, kind: input, shape index: {}]
  %s1 = inlined_call_operand.vmem [shape: f32[2,2,2,8,4], index: 1, kind: input, shape index: {}]
  %s2 = inlined_call_operand.vmem [shape: f32[4,4], index: 2, kind: input, shape index: {}]
  %s3 = inlined_call_operand.vmem [shape: f32[1,4], index: 3, kind: input, shape index: {}]
  %s4 = inlined_call_operand.vmem [shape: f32[4,4], index: 4, kind: input, shape index: {}]
  %s5 = inlined_call_operand.vmem [shape: f32[1,4], index: 5, kind: input, shape index: {}]
  %s6 = inlined_call_operand.vmem [shape: f32[36,4], index: 6, kind: input, shape index: {}]
  %s7 = inlined_call_operand.vmem [shape: f32[1,4], index: 7, kind: input, shape index: {}]
  %s8 = inlined_call_operand.hbm [shape: f32[2,8,8,8], index: 8, kind: output, shape index: {}]
  %s9 = sld [smem:[#allocation0]]
  $region103: #{tpu_custom_call.1} parent=0
    _
  %s11 = ssub.s32 1, %s9
  %s12 = scalar_select 0, %s11, %s9
  $region1: #{tpu_custom_call.1} parent=0
    #allocation2 [shape = 'u8[131072]{0}', space=vmem, size = 0x20000, scoped, tag = 'input window, operand 0']
    #allocation3 [shape = 'u8[32768]{0}', space=vmem, size = 0x8000, scoped, tag = 'output window, operand 0']
    #allocation4 [shape = 's32[2]{0}', space=sflag, size = 0x8, scoped, tag = 'scoped memory for tpu_custom_call.1']
    %13 = vsyncpa [#allocation4], 0
    %s14 = scalar_lea.sflag [#allocation4], 1
    %15 = vsyncpa %s14, 0
    loop: start=0, step=1, limit=6
    $region2: #{tpu_custom_call.1} parent=1 // loop_pre_header
      _
    $region3: #{tpu_custom_call.1} parent=1 // loop_header
      %s17 = sphi 0, %s21
      %p18 = scmp.ge.s32.totalorder %s17, 6
      %s24 = sphi 0, %s36
      %s25 = sphi 0, %s32
      %s26 = sphi 0, %s24
      %s27 = sphi 0, %s25
      %s28 = sphi 0, %s26
      %s29 = sphi 0, %s27
      %s41 = sphi 0, %s43
      %s44 = sphi 0, %s41
      %s45 = sphi 0, %s44
      %s61 = sphi 0, %s45
      %s69 = sphi 0, %s71
      %s72 = sphi 0, %s69
      %s73 = sphi 0, %s72
      %s89 = sphi 0, %s73
      %s93 = sphi 0, %s93
      %s95 = sphi 0, %s93
      %s96 = sphi 0, %s95
      %s110 = sphi 0, %s96
      %s114 = sphi 0, %s114
      %s116 = sphi 0, %s114
      %s117 = sphi 0, %s116
      %s131 = sphi 0, %s117
      %s135 = sphi 0, %s135
      %s137 = sphi 0, %s135
      %s138 = sphi 0, %s137
      %s152 = sphi 0, %s138
      %s156 = sphi 0, %s156
      %s158 = sphi 0, %s156
      %s159 = sphi 0, %s158
      %s173 = sphi 0, %s159
      %s177 = sphi 0, %s177
      %s179 = sphi 0, %s177
      %s180 = sphi 0, %s179
      %s194 = sphi 0, %s180
      %s198 = sphi 0, %s198
      %s200 = sphi 0, %s198
      %s201 = sphi 0, %s200
      %s215 = sphi 0, %s201
      %s223 = sphi 0, %s225
      %s226 = sphi 0, %s223
      %s227 = sphi 0, %s226
      %s243 = sphi 0, %s227
    $region4: #{tpu_custom_call.1} parent=1 // loop_header_branch
      %20 = sbr.rel (%p18) target = $region8
    $region5: #{tpu_custom_call.1} parent=1 // loop_body
      %s22 = ssub.s32 %s17, 1
      %s23 = ssub.s32 %s17, 2
      %s30 = sadd.s32 1, %s25
      %p31 = scmp.ge.s32.totalorder %s30, 2
      %s32 = scalar_select %p31, 0, %s30
      %s33 = sadd.s32 1, %s24
      %s34 = scalar_select %p31, %s33, %s24
      %p35 = scmp.ge.s32.totalorder %s34, 2
      %s36 = scalar_select %p35, 0, %s34
      %s37 = ssub.s32 %s24, %s36
      %s38 = ssub.s32 %s25, %s32
      %s39 = sor.u32 %s37, %s38
      %p40 = scmp.eq.s32.totalorder %s39, 0
      %s42 = sadd.s32 %s41, 1
      %s43 = scalar_select %p40, %s41, %s42
      %p46 = pneg %p40
      %p47 = scmp.eq.s32.totalorder %s17, 3
      %p48 = por %p46, %p47
      %p49 = scmp.ne.s32.totalorder %s41, %s44
      %p50 = scmp.eq.s32.totalorder %s17, 0
      %p51 = por %p49, %p50
      %p52 = scmp.ne.s32.totalorder %s41, %s44
      %p53 = scmp.eq.s32.totalorder %s22, 3
      %p54 = por %p52, %p53
      %p55 = scmp.ne.s32.totalorder %s44, %s45
      %p56 = scmp.eq.s32.totalorder %s22, 0
      %p57 = por %p55, %p56
      %p58 = scmp.ne.s32.totalorder %s44, %s45
      %p59 = scmp.eq.s32.totalorder %s23, 3
      %p60 = por %p58, %p59
      %p62 = scmp.ne.s32.totalorder %s45, %s61
      %p63 = scmp.eq.s32.totalorder %s23, 0
      %p64 = por %p62, %p63
      %s65 = ssub.s32 %s24, %s36
      %s66 = ssub.s32 %s25, %s32
      %s67 = sor.u32 %s65, %s66
      %p68 = scmp.eq.s32.totalorder %s67, 0
      %s70 = sadd.s32 %s69, 1
      %s71 = scalar_select %p68, %s69, %s70
      %p74 = pneg %p68
      %p75 = scmp.eq.s32.totalorder %s17, 3
      %p76 = por %p74, %p75
      %p77 = scmp.ne.s32.totalorder %s69, %s72
      %p78 = scmp.eq.s32.totalorder %s17, 0
      %p79 = por %p77, %p78
      %p80 = scmp.ne.s32.totalorder %s69, %s72
      %p81 = scmp.eq.s32.totalorder %s22, 3
      %p82 = por %p80, %p81
      %p83 = scmp.ne.s32.totalorder %s72, %s73
      %p84 = scmp.eq.s32.totalorder %s22, 0
      %p85 = por %p83, %p84
      %p86 = scmp.ne.s32.totalorder %s72, %s73
      %p87 = scmp.eq.s32.totalorder %s23, 3
      %p88 = por %p86, %p87
      %p90 = scmp.ne.s32.totalorder %s73, %s89
      %p91 = scmp.eq.s32.totalorder %s23, 0
      %p92 = por %p90, %p91
      %s94 = sadd.s32 %s93, 1
      %p97 = scmp.eq.s32.totalorder %s17, 3
      %p98 = scmp.ne.s32.totalorder %s93, %s95
      %p99 = scmp.eq.s32.totalorder %s17, 0
      %p100 = por %p98, %p99
      %p101 = scmp.ne.s32.totalorder %s93, %s95
      %p102 = scmp.eq.s32.totalorder %s22, 3
      %p103 = por %p101, %p102
      %p104 = scmp.ne.s32.totalorder %s95, %s96
      %p105 = scmp.eq.s32.totalorder %s22, 0
      %p106 = por %p104, %p105
      %p107 = scmp.ne.s32.totalorder %s95, %s96
      %p108 = scmp.eq.s32.totalorder %s23, 3
      %p109 = por %p107, %p108
      %p111 = scmp.ne.s32.totalorder %s96, %s110
      %p112 = scmp.eq.s32.totalorder %s23, 0
      %p113 = por %p111, %p112
      %s115 = sadd.s32 %s114, 1
      %p118 = scmp.eq.s32.totalorder %s17, 3
      %p119 = scmp.ne.s32.totalorder %s114, %s116
      %p120 = scmp.eq.s32.totalorder %s17, 0
      %p121 = por %p119, %p120
      %p122 = scmp.ne.s32.totalorder %s114, %s116
      %p123 = scmp.eq.s32.totalorder %s22, 3
      %p124 = por %p122, %p123
      %p125 = scmp.ne.s32.totalorder %s116, %s117
      %p126 = scmp.eq.s32.totalorder %s22, 0
      %p127 = por %p125, %p126
      %p128 = scmp.ne.s32.totalorder %s116, %s117
      %p129 = scmp.eq.s32.totalorder %s23, 3
      %p130 = por %p128, %p129
      %p132 = scmp.ne.s32.totalorder %s117, %s131
      %p133 = scmp.eq.s32.totalorder %s23, 0
      %p134 = por %p132, %p133
      %s136 = sadd.s32 %s135, 1
      %p139 = scmp.eq.s32.totalorder %s17, 3
      %p140 = scmp.ne.s32.totalorder %s135, %s137
      %p141 = scmp.eq.s32.totalorder %s17, 0
      %p142 = por %p140, %p141
      %p143 = scmp.ne.s32.totalorder %s135, %s137
      %p144 = scmp.eq.s32.totalorder %s22, 3
      %p145 = por %p143, %p144
      %p146 = scmp.ne.s32.totalorder %s137, %s138
      %p147 = scmp.eq.s32.totalorder %s22, 0
      %p148 = por %p146, %p147
      %p149 = scmp.ne.s32.totalorder %s137, %s138
      %p150 = scmp.eq.s32.totalorder %s23, 3
      %p151 = por %p149, %p150
      %p153 = scmp.ne.s32.totalorder %s138, %s152
      %p154 = scmp.eq.s32.totalorder %s23, 0
      %p155 = por %p153, %p154
      %s157 = sadd.s32 %s156, 1
      %p160 = scmp.eq.s32.totalorder %s17, 3
      %p161 = scmp.ne.s32.totalorder %s156, %s158
      %p162 = scmp.eq.s32.totalorder %s17, 0
      %p163 = por %p161, %p162
      %p164 = scmp.ne.s32.totalorder %s156, %s158
      %p165 = scmp.eq.s32.totalorder %s22, 3
      %p166 = por %p164, %p165
      %p167 = scmp.ne.s32.totalorder %s158, %s159
      %p168 = scmp.eq.s32.totalorder %s22, 0
      %p169 = por %p167, %p168
      %p170 = scmp.ne.s32.totalorder %s158, %s159
      %p171 = scmp.eq.s32.totalorder %s23, 3
      %p172 = por %p170, %p171
      %p174 = scmp.ne.s32.totalorder %s159, %s173
      %p175 = scmp.eq.s32.totalorder %s23, 0
      %p176 = por %p174, %p175
      %s178 = sadd.s32 %s177, 1
      %p181 = scmp.eq.s32.totalorder %s17, 3
      %p182 = scmp.ne.s32.totalorder %s177, %s179
      %p183 = scmp.eq.s32.totalorder %s17, 0
      %p184 = por %p182, %p183
      %p185 = scmp.ne.s32.totalorder %s177, %s179
      %p186 = scmp.eq.s32.totalorder %s22, 3
      %p187 = por %p185, %p186
      %p188 = scmp.ne.s32.totalorder %s179, %s180
      %p189 = scmp.eq.s32.totalorder %s22, 0
      %p190 = por %p188, %p189
      %p191 = scmp.ne.s32.totalorder %s179, %s180
      %p192 = scmp.eq.s32.totalorder %s23, 3
      %p193 = por %p191, %p192
      %p195 = scmp.ne.s32.totalorder %s180, %s194
      %p196 = scmp.eq.s32.totalorder %s23, 0
      %p197 = por %p195, %p196
      %s199 = sadd.s32 %s198, 1
      %p202 = scmp.eq.s32.totalorder %s17, 3
      %p203 = scmp.ne.s32.totalorder %s198, %s200
      %p204 = scmp.eq.s32.totalorder %s17, 0
      %p205 = por %p203, %p204
      %p206 = scmp.ne.s32.totalorder %s198, %s200
      %p207 = scmp.eq.s32.totalorder %s22, 3
      %p208 = por %p206, %p207
      %p209 = scmp.ne.s32.totalorder %s200, %s201
      %p210 = scmp.eq.s32.totalorder %s22, 0
      %p211 = por %p209, %p210
      %p212 = scmp.ne.s32.totalorder %s200, %s201
      %p213 = scmp.eq.s32.totalorder %s23, 3
      %p214 = por %p212, %p213
      %p216 = scmp.ne.s32.totalorder %s201, %s215
      %p217 = scmp.eq.s32.totalorder %s23, 0
      %p218 = por %p216, %p217
      %s219 = ssub.s32 %s24, %s36
      %s220 = ssub.s32 %s25, %s32
      %s221 = sor.u32 %s219, %s220
      %p222 = scmp.eq.s32.totalorder %s221, 0
      %s224 = sadd.s32 %s223, 1
      %s225 = scalar_select %p222, %s223, %s224
      %p228 = pneg %p222
      %p229 = scmp.eq.s32.totalorder %s17, 3
      %p230 = por %p228, %p229
      %p231 = scmp.ne.s32.totalorder %s223, %s226
      %p232 = scmp.eq.s32.totalorder %s17, 0
      %p233 = por %p231, %p232
      %p234 = scmp.ne.s32.totalorder %s223, %s226
      %p235 = scmp.eq.s32.totalorder %s22, 3
      %p236 = por %p234, %p235
      %p237 = scmp.ne.s32.totalorder %s226, %s227
      %p238 = scmp.eq.s32.totalorder %s22, 0
      %p239 = por %p237, %p238
      %p240 = scmp.ne.s32.totalorder %s226, %s227
      %p241 = scmp.eq.s32.totalorder %s23, 3
      %p242 = por %p240, %p241
      %p244 = scmp.ne.s32.totalorder %s227, %s243
      %p245 = scmp.eq.s32.totalorder %s23, 0
      %p246 = por %p244, %p245
      %p247 = scmp.le.s32.totalorder 1, %s17
      %p248 = scmp.lt.s32.totalorder %s17, 5
      %p249 = pnand %p247, %p248
      %p250 = pneg %p249
      // Predicated region
      $region9: #{tpu_custom_call.1} parent=5 // pred_check
        _
      $region10: #{tpu_custom_call.1} parent=5 // pred_check_branch
        %252 = sbr.rel (%p249) target = $region12
      $region11: #{tpu_custom_call.1} parent=5 // pred_region
        %s253 = ssub.s32 %s17, 1
        // Predicated region
        $region13: #{tpu_custom_call.1} parent=11 // pred_check
          %p254 = pneg %p106
        $region14: #{tpu_custom_call.1} parent=11 // pred_check_branch
          %256 = sbr.rel (%p254) target = $region16
        $region15: #{tpu_custom_call.1} parent=11 // pred_region
          _
        $region16: #{tpu_custom_call.1} parent=11 // pred_fallthru
          _
        // Predicated region
        $region17: #{tpu_custom_call.1} parent=11 // pred_check
          %p257 = pneg %p127
        $region18: #{tpu_custom_call.1} parent=11 // pred_check_branch
          %259 = sbr.rel (%p257) target = $region20
        $region19: #{tpu_custom_call.1} parent=11 // pred_region
          _
        $region20: #{tpu_custom_call.1} parent=11 // pred_fallthru
          _
        // Predicated region
        $region21: #{tpu_custom_call.1} parent=11 // pred_check
          %p260 = pneg %p148
        $region22: #{tpu_custom_call.1} parent=11 // pred_check_branch
          %262 = sbr.rel (%p260) target = $region24
        $region23: #{tpu_custom_call.1} parent=11 // pred_region
          _
        $region24: #{tpu_custom_call.1} parent=11 // pred_fallthru
          _
        // Predicated region
        $region25: #{tpu_custom_call.1} parent=11 // pred_check
          %p263 = pneg %p169
        $region26: #{tpu_custom_call.1} parent=11 // pred_check_branch
          %265 = sbr.rel (%p263) target = $region28
        $region27: #{tpu_custom_call.1} parent=11 // pred_region
          _
        $region28: #{tpu_custom_call.1} parent=11 // pred_fallthru
          _
        // Predicated region
        $region29: #{tpu_custom_call.1} parent=11 // pred_check
          %p266 = pneg %p190
        $region30: #{tpu_custom_call.1} parent=11 // pred_check_branch
          %268 = sbr.rel (%p266) target = $region32
        $region31: #{tpu_custom_call.1} parent=11 // pred_region
          _
        $region32: #{tpu_custom_call.1} parent=11 // pred_fallthru
          _
        // Predicated region
        $region33: #{tpu_custom_call.1} parent=11 // pred_check
          %p269 = pneg %p211
        $region34: #{tpu_custom_call.1} parent=11 // pred_check_branch
          %271 = sbr.rel (%p269) target = $region36
        $region35: #{tpu_custom_call.1} parent=11 // pred_region
          _
        $region36: #{tpu_custom_call.1} parent=11 // pred_fallthru
          _
      $region12: #{tpu_custom_call.1} parent=5 // pred_fallthru
        _
      %p272 = scmp.lt.s32.totalorder %s17, 4
      // Predicated region
      $region37: #{tpu_custom_call.1} parent=5 // pred_check
        %p273 = pneg %p272
      $region38: #{tpu_custom_call.1} parent=5 // pred_check_branch
        %275 = sbr.rel (%p273) target = $region40
      $region39: #{tpu_custom_call.1} parent=5 // pred_region
        // Predicated region
        $region41: #{tpu_custom_call.1} parent=39 // pred_check
          %p276 = pneg %p51
        $region42: #{tpu_custom_call.1} parent=39 // pred_check_branch
          %278 = sbr.rel (%p276) target = $region44
        $region43: #{tpu_custom_call.1} parent=39 // pred_region
          %s279 = sand.u32 %s41, 1
          %s280 = sand.u32 %s41, 1
          %s281 = smul.addr %s280, 128
          %s282 = scalar_lea.vmem [#allocation2], %s281
          %s283 = smul.u32 4, %s25
          %s284 = smul.addr %s24, 32
          %s285 = sadd.s32 %s283, %s284
          %s286 = smul.addr %s285, 8
          %s287 = scalar_lea.vmem %s0, %s286
          // Predicated region
          $region45: #{tpu_custom_call.1} parent=43 // pred_check
            _
          $region46: #{tpu_custom_call.1} parent=43 // pred_check_branch
            %289 = sbr.rel (0) target = $region48
          $region47: #{tpu_custom_call.1} parent=43 // pred_region
            // Predicated region
            $region49: #{tpu_custom_call.1} parent=47 // pred_check
              _
            $region50: #{tpu_custom_call.1} parent=47 // pred_check_branch
              %291 = sbr.rel (0) target = $region52
            $region51: #{tpu_custom_call.1} parent=47 // pred_region
              // Predicated region
              $region64: #{tpu_custom_call.1} parent=51 // pred_check
                _
              $region65: #{tpu_custom_call.1} parent=51 // pred_check_branch
                %337 = sbr.rel (0) target = $region67
              $region66: #{tpu_custom_call.1} parent=51 // pred_region
                loop: start=0, step=1, limit=1
                $region68: #{tpu_custom_call.1} parent=66 // loop_pre_header
                  _
                $region69: #{tpu_custom_call.1} parent=66 // loop_header
                  %s339 = sphi 0, %s343
                  %p340 = scmp.ge.s32.totalorder %s339, 1
                  %s344 = sphi %s287, %s287
                  %s345 = sphi %s282, %s282
                $region70: #{tpu_custom_call.1} parent=66 // loop_header_branch
                  %342 = sbr.rel (%p340) target = $region74
                $region71: #{tpu_custom_call.1} parent=66 // loop_body
                  %v346 = vld [vmem:[%s344] sm:$0xff]
                  %347 = vst [vmem:[%s345] sm:$0xff] %v346
                  %v348 = vld [vmem:[%s344 + $0x8] sm:$0xff]
                  %349 = vst [vmem:[%s345 + $0x8] sm:$0xff] %v348
                  %v350 = vld [vmem:[%s344 + $0x10] sm:$0xff]
                  %351 = vst [vmem:[%s345 + $0x10] sm:$0xff] %v350
                  %v352 = vld [vmem:[%s344 + $0x18] sm:$0xff]
                  %353 = vst [vmem:[%s345 + $0x18] sm:$0xff] %v352
                  %v354 = vld [vmem:[%s344 + $0x40] sm:$0xff]
                  %355 = vst [vmem:[%s345 + $0x20] sm:$0xff] %v354
                  %v356 = vld [vmem:[%s344 + $0x48] sm:$0xff]
                  %357 = vst [vmem:[%s345 + $0x28] sm:$0xff] %v356
                  %v358 = vld [vmem:[%s344 + $0x50] sm:$0xff]
                  %359 = vst [vmem:[%s345 + $0x30] sm:$0xff] %v358
                  %v360 = vld [vmem:[%s344 + $0x58] sm:$0xff]
                  %361 = vst [vmem:[%s345 + $0x38] sm:$0xff] %v360
                  %v362 = vld [vmem:[%s344 + $0x80] sm:$0xff]
                  %363 = vst [vmem:[%s345 + $0x40] sm:$0xff] %v362
                  %v364 = vld [vmem:[%s344 + $0x88] sm:$0xff]
                  %365 = vst [vmem:[%s345 + $0x48] sm:$0xff] %v364
                  %v366 = vld [vmem:[%s344 + $0x90] sm:$0xff]
                  %367 = vst [vmem:[%s345 + $0x50] sm:$0xff] %v366
                  %v368 = vld [vmem:[%s344 + $0x98] sm:$0xff]
                  %369 = vst [vmem:[%s345 + $0x58] sm:$0xff] %v368
                  %v370 = vld [vmem:[%s344 + $0xc0] sm:$0xff]
                  %371 = vst [vmem:[%s345 + $0x60] sm:$0xff] %v370
                  %v372 = vld [vmem:[%s344 + $0xc8] sm:$0xff]
                  %373 = vst [vmem:[%s345 + $0x68] sm:$0xff] %v372
                  %v374 = vld [vmem:[%s344 + $0xd0] sm:$0xff]
                  %375 = vst [vmem:[%s345 + $0x70] sm:$0xff] %v374
                  %v376 = vld [vmem:[%s344 + $0xd8] sm:$0xff]
                  %377 = vst [vmem:[%s345 + $0x78] sm:$0xff] %v376
                $region72: #{tpu_custom_call.1} parent=66 // loop_footer
                  %s343 = sadd.s32 1, %s339
                $region73: #{tpu_custom_call.1} parent=66 // loop_footer_branch
                  %338 = sbr.rel target = $region69
                $region74: #{tpu_custom_call.1} parent=66 // loop_exit
                  _
              $region67: #{tpu_custom_call.1} parent=51 // pred_fallthru
                _
              // Predicated region
              $region75: #{tpu_custom_call.1} parent=51 // pred_check
                _
              $region76: #{tpu_custom_call.1} parent=51 // pred_check_branch
                %379 = sbr.rel target = $region78
              $region77: #{tpu_custom_call.1} parent=51 // pred_region
                _
              $region78: #{tpu_custom_call.1} parent=51 // pred_fallthru
                _
            $region52: #{tpu_custom_call.1} parent=47 // pred_fallthru
              _
            // Predicated region
            $region53: #{tpu_custom_call.1} parent=47 // pred_check
              _
            $region54: #{tpu_custom_call.1} parent=47 // pred_check_branch
              %293 = sbr.rel target = $region56
            $region55: #{tpu_custom_call.1} parent=47 // pred_region
              %s295 = ssub.s32 256, 1
              loop: start=0, step=1, limit=1
              $region57: #{tpu_custom_call.1} parent=55 // loop_pre_header
                _
              $region58: #{tpu_custom_call.1} parent=55 // loop_header
                %s297 = sphi 0, %s301
                %p298 = scmp.ge.s32.totalorder %s297, 1
                %s302 = sphi %s287, %s287
                %s303 = sphi %s282, %s282
              $region59: #{tpu_custom_call.1} parent=55 // loop_header_branch
                %300 = sbr.rel (%p298) target = $region63
              $region60: #{tpu_custom_call.1} parent=55 // loop_body
                %v304 = vld [vmem:[%s302] sm:%s295]
                %305 = vst [vmem:[%s303] sm:%s295] %v304
                %v306 = vld [vmem:[%s302 + $0x8] sm:%s295]
                %307 = vst [vmem:[%s303 + $0x8] sm:%s295] %v306
                %v308 = vld [vmem:[%s302 + $0x10] sm:%s295]
                %309 = vst [vmem:[%s303 + $0x10] sm:%s295] %v308
                %v310 = vld [vmem:[%s302 + $0x18] sm:%s295]
                %311 = vst [vmem:[%s303 + $0x18] sm:%s295] %v310
                %v312 = vld [vmem:[%s302 + $0x40] sm:%s295]
                %313 = vst [vmem:[%s303 + $0x20] sm:%s295] %v312
                %v314 = vld [vmem:[%s302 + $0x48] sm:%s295]
                %315 = vst [vmem:[%s303 + $0x28] sm:%s295] %v314
                %v316 = vld [vmem:[%s302 + $0x50] sm:%s295]
                %317 = vst [vmem:[%s303 + $0x30] sm:%s295] %v316
                %v318 = vld [vmem:[%s302 + $0x58] sm:%s295]
                %319 = vst [vmem:[%s303 + $0x38] sm:%s295] %v318
                %v320 = vld [vmem:[%s302 + $0x80] sm:%s295]
                %321 = vst [vmem:[%s303 + $0x40] sm:%s295] %v320
                %v322 = vld [vmem:[%s302 + $0x88] sm:%s295]
                %323 = vst [vmem:[%s303 + $0x48] sm:%s295] %v322
                %v324 = vld [vmem:[%s302 + $0x90] sm:%s295]
                %325 = vst [vmem:[%s303 + $0x50] sm:%s295] %v324
                %v326 = vld [vmem:[%s302 + $0x98] sm:%s295]
                %327 = vst [vmem:[%s303 + $0x58] sm:%s295] %v326
                %v328 = vld [vmem:[%s302 + $0xc0] sm:%s295]
                %329 = vst [vmem:[%s303 + $0x60] sm:%s295] %v328
                %v330 = vld [vmem:[%s302 + $0xc8] sm:%s295]
                %331 = vst [vmem:[%s303 + $0x68] sm:%s295] %v330
                %v332 = vld [vmem:[%s302 + $0xd0] sm:%s295]
                %333 = vst [vmem:[%s303 + $0x70] sm:%s295] %v332
                %v334 = vld [vmem:[%s302 + $0xd8] sm:%s295]
                %335 = vst [vmem:[%s303 + $0x78] sm:%s295] %v334
              $region61: #{tpu_custom_call.1} parent=55 // loop_footer
                %s301 = sadd.s32 1, %s297
              $region62: #{tpu_custom_call.1} parent=55 // loop_footer_branch
                %296 = sbr.rel target = $region58
              $region63: #{tpu_custom_call.1} parent=55 // loop_exit
                _
            $region56: #{tpu_custom_call.1} parent=47 // pred_fallthru
              _
          $region48: #{tpu_custom_call.1} parent=43 // pred_fallthru
            _
          %380 = vnop
        $region44: #{tpu_custom_call.1} parent=39 // pred_fallthru
          _
        // Predicated region
        $region79: #{tpu_custom_call.1} parent=39 // pred_check
          %p381 = pneg %p79
        $region80: #{tpu_custom_call.1} parent=39 // pred_check_branch
          %383 = sbr.rel (%p381) target = $region82
        $region81: #{tpu_custom_call.1} parent=39 // pred_region
          %p384 = scmp.lt.s32.totalorder %s24, 1
          %s385 = scalar_select %p384, %s24, 1
          %p386 = scmp.lt.s32.totalorder %s25, 1
          %s387 = scalar_select %p386, %s25, 1
          %s388 = smul.addr %s387, 2
          %s389 = smul.addr %s385, 4
          %s390 = sadd.s32 %s388, %s389
          %s391 = smul.addr %s390, 8
          %s392 = scalar_lea.vmem %s1, %s391
        $region82: #{tpu_custom_call.1} parent=39 // pred_fallthru
          _
      $region40: #{tpu_custom_call.1} parent=5 // pred_fallthru
        _
      %p393 = scmp.le.s32.totalorder 1, %s17
      %p394 = scmp.lt.s32.totalorder %s17, 5
      %p395 = pnand %p393, %p394
      %p396 = pneg %p395
      // Predicated region
      $region83: #{tpu_custom_call.1} parent=5 // pred_check
        _
      $region84: #{tpu_custom_call.1} parent=5 // pred_check_branch
        %398 = sbr.rel (%p395) target = $region86
      $region85: #{tpu_custom_call.1} parent=5 // pred_region
        %s399 = ssub.s32 %s17, 1
        %s400 = sand.u32 %s44, 1
        %s401 = sand.u32 %s44, 1
        %s402 = smul.addr %s401, 128
        %s403 = scalar_lea.vmem [#allocation2], %s402
        // Predicated region
        $region87: #{tpu_custom_call.1} parent=85 // pred_check
          %p404 = pneg %p57
        $region88: #{tpu_custom_call.1} parent=85 // pred_check_branch
          %406 = sbr.rel (%p404) target = $region90
        $region89: #{tpu_custom_call.1} parent=85 // pred_region
          _
        $region90: #{tpu_custom_call.1} parent=85 // pred_fallthru
          _
        %s407 = sand.u32 %s44, 1
        %s408 = sand.u32 %s44, 1
        %s409 = smul.addr %s408, 128
        %s410 = scalar_lea.vmem [#allocation2], %s409
        %p411 = pneg %p57
        %p412 = pneg %p54
        %p413 = scmp.lt.s32.totalorder %s26, 1
        %s414 = scalar_select %p413, %s26, 1
        %p415 = scmp.lt.s32.totalorder %s27, 1
        %s416 = scalar_select %p415, %s27, 1
        %s417 = smul.addr %s416, 2
        %s418 = smul.addr %s414, 4
        %s419 = sadd.s32 %s417, %s418
        %s420 = smul.addr %s419, 8
        %s421 = scalar_lea.vmem %s1, %s420
        %p422 = pneg %p85
        %p423 = pneg %p82
        %p424 = pneg %p106
        %p425 = pneg %p103
        %p426 = pneg %p127
        %p427 = pneg %p124
        %p428 = pneg %p148
        %p429 = pneg %p145
        %p430 = pneg %p169
        %p431 = pneg %p166
        %p432 = pneg %p190
        %p433 = pneg %p187
        %p434 = pneg %p211
        %p435 = pneg %p208
        %p436 = pneg %p239
        %p437 = pneg %p236
        %s438 = sand.u32 %s226, 1
        %s439 = scalar_lea.sflag [#allocation4], %s438
        %s440 = sand.u32 %s226, 1
        %s441 = smul.addr %s440, 32
        %s442 = scalar_lea.vmem [#allocation3], %s441
        %s443 = smul.u32 4, %s27
        %p444 = scmp.lt.s32.totalorder %s26, 1
        %s445 = scalar_select %p444, %s26, 1
        %p446 = scmp.lt.s32.totalorder %s27, 1
        %s447 = scalar_select %p446, %s27, 1
        %s448 = smul.addr %s447, 2
        %s449 = smul.addr %s445, 4
        %s450 = sadd.s32 %s448, %s449
        %s451 = smul.addr %s450, 8
        %s452 = scalar_lea.vmem %s1, %s451
        %s453 = smul.u32 4, %s27
        %v454 = vld [vmem:[%s403] sm:$0xff]
        %v455 = vld [vmem:[%s403 + $0x8] sm:$0xff]
        %v456 = vld [vmem:[%s403 + $0x10] sm:$0xff]
        %v457 = vld [vmem:[%s403 + $0x18] sm:$0xff]
        %v458 = vld [vmem:[%s403 + $0x20] sm:$0xff]
        %v459 = vld [vmem:[%s403 + $0x28] sm:$0xff]
        %v460 = vld [vmem:[%s403 + $0x30] sm:$0xff]
        %v461 = vld [vmem:[%s403 + $0x38] sm:$0xff]
        %v462 = vld [vmem:[%s403 + $0x40] sm:$0xff]
        %v463 = vld [vmem:[%s403 + $0x48] sm:$0xff]
        %v464 = vld [vmem:[%s403 + $0x50] sm:$0xff]
        %v465 = vld [vmem:[%s403 + $0x58] sm:$0xff]
        %v466 = vld [vmem:[%s403 + $0x60] sm:$0xff]
        %v467 = vld [vmem:[%s403 + $0x68] sm:$0xff]
        %v468 = vld [vmem:[%s403 + $0x70] sm:$0xff]
        %v469 = vld [vmem:[%s403 + $0x78] sm:$0xff]
        %v470 = vld [vmem:[%s452] sm:$0xff]
        %v471 = vld [vmem:[%s452 + $0x8] sm:$0xff]
        %v472 = vmax.f32 %v454, %v458
        %v473 = vmax.f32 %v455, %v459
        %v474 = vmax.f32 %v456, %v460
        %v475 = vmax.f32 %v457, %v461
        %v476 = vmax.f32 %v462, %v466
        %v477 = vmax.f32 %v463, %v467
        %v478 = vmax.f32 %v464, %v468
        %v479 = vmax.f32 %v465, %v469
        %v480 = vmax.f32 %v472, %v476
        %v481 = vmax.f32 %v473, %v477
        %v482 = vmax.f32 %v474, %v478
        %v483 = vmax.f32 %v475, %v479
        %v484 = vld [vmem:[%s2] sm:$0xf]
        %v485 = vld [vmem:[%s3] sm:$0x1]
        %v487 = vlaneseq
        %v488 = vshrl.u32 %v487, 7
        %v489 = vsub.s32 0, %v488
        %v490 = vrot.slane %v485, %v489
        %vm492 = vcmask 31744
        %v494 = vsel %vm492, %v480, 0
        %v497 = vsel %vm492, %v481, 0
        %v500 = vsel %vm492, %v482, 0
        %v503 = vsel %vm492, %v483, 0
        %vm505 = vcmask 1043456
        %v507 = vsel %vm505, %v484, 0
        %509 = vmatprep.subr.mxu0 0.0
        %510 = vmatpush1.msra.mxu0 0.0
        %511 = vmatprep.subr.mxu0 0.0
        %512 = vmatpush1.msra.mxu0 0.0
        %513 = vmatprep.subr.mxu0 0.0
        %514 = vmatpush1.msra.mxu0 0.0
        %515 = vmatprep.subr.mxu0 0.0
        %516 = vmatpush1.msra.mxu0 0.0
        %517 = vmatprep.subr.mxu0 0.0
        %518 = vmatpush1.msra.mxu0 0.0
        %519 = vmatprep.subr.mxu0 0.0
        %520 = vmatpush1.msra.mxu0 0.0
        %521 = vmatprep.subr.mxu0 0.0
        %522 = vmatpush1.msra.mxu0 0.0
        %523 = vmatprep.subr.mxu0 0.0
        %524 = vmatpush1.msra.mxu0 0.0
        %525 = vmatprep.subr.mxu0 0.0
        %526 = vmatpush1.msra.mxu0 0.0
        %527 = vmatprep.subr.mxu0 0.0
        %528 = vmatpush1.msra.mxu0 0.0
        %529 = vmatprep.subr.mxu0 0.0
        %530 = vmatpush1.msra.mxu0 0.0
        %531 = vmatprep.subr.mxu0 0.0
        %532 = vmatpush1.msra.mxu0 0.0
        %533 = vmatprep.subr.mxu0 0.0
        %534 = vmatpush1.msra.mxu0 0.0
        %535 = vmatprep.subr.mxu0 0.0
        %536 = vmatpush1.msra.mxu0 0.0
        %537 = vmatprep.subr.mxu0 0.0
        %538 = vmatpush1.msra.mxu0 0.0
        %539 = vmatprep.subr.mxu0 0.0
        %540 = vmatpush1.msra.mxu0 %v507
        %541 = vmatprep.subr.mxu0 0.0
        %542 = vmatpush2.msra.mxu0 0.0
        %543 = vmatprep.subr.mxu0 0.0
        %544 = vmatpush2.msra.mxu0 0.0
        %545 = vmatprep.subr.mxu0 0.0
        %546 = vmatpush2.msra.mxu0 0.0
        %547 = vmatprep.subr.mxu0 0.0
        %548 = vmatpush2.msra.mxu0 0.0
        %549 = vmatprep.subr.mxu0 0.0
        %550 = vmatpush2.msra.mxu0 0.0
        %551 = vmatprep.subr.mxu0 0.0
        %552 = vmatpush2.msra.mxu0 0.0
        %553 = vmatprep.subr.mxu0 0.0
        %554 = vmatpush2.msra.mxu0 0.0
        %555 = vmatprep.subr.mxu0 0.0
        %556 = vmatpush2.msra.mxu0 0.0
        %557 = vmatprep.subr.mxu0 0.0
        %558 = vmatpush2.msra.mxu0 0.0
        %559 = vmatprep.subr.mxu0 0.0
        %560 = vmatpush2.msra.mxu0 0.0
        %561 = vmatprep.subr.mxu0 0.0
        %562 = vmatpush2.msra.mxu0 0.0
        %563 = vmatprep.subr.mxu0 0.0
        %564 = vmatpush2.msra.mxu0 0.0
        %565 = vmatprep.subr.mxu0 0.0
        %566 = vmatpush2.msra.mxu0 0.0
        %567 = vmatprep.subr.mxu0 0.0
        %568 = vmatpush2.msra.mxu0 0.0
        %569 = vmatprep.subr.mxu0 0.0
        %570 = vmatpush2.msra.mxu0 0.0
        %571 = vmatprep.subr.mxu0 0.0
        %572 = vmatpush2.msra.mxu0 0.0
        %573 = vmatprep.mubr.f32.mxu0 0.0
        %574 = vmatmul.mubr.f32.gmra.mxu0 %v494
        %v575 = vpop.f32.mrf.mxu0
        %v576 = vadd.f32 %v490, %v575
        %v577 = vpop.f32.mrf.mxu0
        %578 = vmatprep.mubr.f32.mxu0 0.0
        %579 = vmatmul.mubr.f32.gmra.mxu0 %v497
        %v580 = vpop.f32.mrf.mxu0
        %v581 = vadd.f32 %v490, %v580
        %v582 = vpop.f32.mrf.mxu0
        %583 = vmatprep.mubr.f32.mxu0 0.0
        %584 = vmatmul.mubr.f32.gmra.mxu0 %v500
        %v585 = vpop.f32.mrf.mxu0
        %v586 = vadd.f32 %v490, %v585
        %v587 = vpop.f32.mrf.mxu0
        %588 = vmatprep.mubr.f32.mxu0 0.0
        %589 = vmatmul.mubr.f32.gmra.mxu0 %v503
        %v590 = vpop.f32.mrf.mxu0
        %v591 = vadd.f32 %v490, %v590
        %v592 = vpop.f32.mrf.mxu0
        %593 = vdwg.mxu0
        %v594 = vmul.f32 %v576, 0.5
        %v595 = vmul.f32 %v581, 0.5
        %v596 = vmul.f32 %v586, 0.5
        %v597 = vmul.f32 %v591, 0.5
        %v598 = vtanh.pop %v594
        %v599 = vtanh.pop %v595
        %v600 = vtanh.pop %v596
        %v601 = vtanh.pop %v597
        %v602 = vmul.f32 %v598, 0.5
        %v603 = vmul.f32 %v599, 0.5
        %v604 = vmul.f32 %v600, 0.5
        %v605 = vmul.f32 %v601, 0.5
        %v606 = vadd.f32 %v602, 0.5
        %v607 = vadd.f32 %v603, 0.5
        %v608 = vadd.f32 %v604, 0.5
        %v609 = vadd.f32 %v605, 0.5
        %v610 = vmul.f32 %v576, %v606
        %v611 = vmul.f32 %v581, %v607
        %v612 = vmul.f32 %v586, %v608
        %v613 = vmul.f32 %v591, %v609
        %v614 = vld [vmem:[%s4] sm:$0xf]
        %v615 = vld [vmem:[%s5] sm:$0x1]
        %v617 = vlaneseq
        %v618 = vshrl.u32 %v617, 7
        %v619 = vsub.s32 0, %v618
        %v620 = vrot.slane %v615, %v619
        %v623 = vsel %vm492, %v454, 0
        %v626 = vsel %vm492, %v455, 0
        %v629 = vsel %vm492, %v456, 0
        %v632 = vsel %vm492, %v457, 0
        %v635 = vsel %vm492, %v458, 0
        %v638 = vsel %vm492, %v459, 0
        %v641 = vsel %vm492, %v460, 0
        %v644 = vsel %vm492, %v461, 0
        %v647 = vsel %vm492, %v462, 0
        %v650 = vsel %vm492, %v463, 0
        %v653 = vsel %vm492, %v464, 0
        %v656 = vsel %vm492, %v465, 0
        %v659 = vsel %vm492, %v466, 0
        %v662 = vsel %vm492, %v467, 0
        %v665 = vsel %vm492, %v468, 0
        %v668 = vsel %vm492, %v469, 0
        %v671 = vsel %vm492, %v470, 0
        %v674 = vsel %vm492, %v471, 0
        %v677 = vsel %vm505, %v614, 0
        %679 = vmatprep.subr.mxu0 0.0
        %680 = vmatpush1.msra.mxu0 0.0
        %681 = vmatprep.subr.mxu0 0.0
        %682 = vmatpush1.msra.mxu0 0.0
        %683 = vmatprep.subr.mxu0 0.0
        %684 = vmatpush1.msra.mxu0 0.0
        %685 = vmatprep.subr.mxu0 0.0
        %686 = vmatpush1.msra.mxu0 0.0
        %687 = vmatprep.subr.mxu0 0.0
        %688 = vmatpush1.msra.mxu0 0.0
        %689 = vmatprep.subr.mxu0 0.0
        %690 = vmatpush1.msra.mxu0 0.0
        %691 = vmatprep.subr.mxu0 0.0
        %692 = vmatpush1.msra.mxu0 0.0
        %693 = vmatprep.subr.mxu0 0.0
        %694 = vmatpush1.msra.mxu0 0.0
        %695 = vmatprep.subr.mxu0 0.0
        %696 = vmatpush1.msra.mxu0 0.0
        %697 = vmatprep.subr.mxu0 0.0
        %698 = vmatpush1.msra.mxu0 0.0
        %699 = vmatprep.subr.mxu0 0.0
        %700 = vmatpush1.msra.mxu0 0.0
        %701 = vmatprep.subr.mxu0 0.0
        %702 = vmatpush1.msra.mxu0 0.0
        %703 = vmatprep.subr.mxu0 0.0
        %704 = vmatpush1.msra.mxu0 0.0
        %705 = vmatprep.subr.mxu0 0.0
        %706 = vmatpush1.msra.mxu0 0.0
        %707 = vmatprep.subr.mxu0 0.0
        %708 = vmatpush1.msra.mxu0 0.0
        %709 = vmatprep.subr.mxu0 0.0
        %710 = vmatpush1.msra.mxu0 %v677
        %711 = vmatprep.subr.mxu0 0.0
        %712 = vmatpush2.msra.mxu0 0.0
        %713 = vmatprep.subr.mxu0 0.0
        %714 = vmatpush2.msra.mxu0 0.0
        %715 = vmatprep.subr.mxu0 0.0
        %716 = vmatpush2.msra.mxu0 0.0
        %717 = vmatprep.subr.mxu0 0.0
        %718 = vmatpush2.msra.mxu0 0.0
        %719 = vmatprep.subr.mxu0 0.0
        %720 = vmatpush2.msra.mxu0 0.0
        %721 = vmatprep.subr.mxu0 0.0
        %722 = vmatpush2.msra.mxu0 0.0
        %723 = vmatprep.subr.mxu0 0.0
        %724 = vmatpush2.msra.mxu0 0.0
        %725 = vmatprep.subr.mxu0 0.0
        %726 = vmatpush2.msra.mxu0 0.0
        %727 = vmatprep.subr.mxu0 0.0
        %728 = vmatpush2.msra.mxu0 0.0
        %729 = vmatprep.subr.mxu0 0.0
        %730 = vmatpush2.msra.mxu0 0.0
        %731 = vmatprep.subr.mxu0 0.0
        %732 = vmatpush2.msra.mxu0 0.0
        %733 = vmatprep.subr.mxu0 0.0
        %734 = vmatpush2.msra.mxu0 0.0
        %735 = vmatprep.subr.mxu0 0.0
        %736 = vmatpush2.msra.mxu0 0.0
        %737 = vmatprep.subr.mxu0 0.0
        %738 = vmatpush2.msra.mxu0 0.0
        %739 = vmatprep.subr.mxu0 0.0
        %740 = vmatpush2.msra.mxu0 0.0
        %741 = vmatprep.subr.mxu0 0.0
        %742 = vmatpush2.msra.mxu0 0.0
        %743 = vmatprep.mubr.f32.mxu0 0.0
        %744 = vmatmul.mubr.f32.gmra.mxu0 %v623
        %v745 = vpop.f32.mrf.mxu0
        %v746 = vadd.f32 %v620, %v745
        %v747 = vpop.f32.mrf.mxu0
        %748 = vmatprep.mubr.f32.mxu0 0.0
        %749 = vmatmul.mubr.f32.gmra.mxu0 %v626
        %v750 = vpop.f32.mrf.mxu0
        %v751 = vadd.f32 %v620, %v750
        %v752 = vpop.f32.mrf.mxu0
        %753 = vmatprep.mubr.f32.mxu0 0.0
        %754 = vmatmul.mubr.f32.gmra.mxu0 %v629
        %v755 = vpop.f32.mrf.mxu0
        %v756 = vadd.f32 %v620, %v755
        %v757 = vpop.f32.mrf.mxu0
        %758 = vmatprep.mubr.f32.mxu0 0.0
        %759 = vmatmul.mubr.f32.gmra.mxu0 %v632
        %v760 = vpop.f32.mrf.mxu0
        %v761 = vadd.f32 %v620, %v760
        %v762 = vpop.f32.mrf.mxu0
        %763 = vmatprep.mubr.f32.mxu0 0.0
        %764 = vmatmul.mubr.f32.gmra.mxu0 %v635
        %v765 = vpop.f32.mrf.mxu0
        %v766 = vadd.f32 %v620, %v765
        %v767 = vpop.f32.mrf.mxu0
        %768 = vmatprep.mubr.f32.mxu0 0.0
        %769 = vmatmul.mubr.f32.gmra.mxu0 %v638
        %v770 = vpop.f32.mrf.mxu0
        %v771 = vadd.f32 %v620, %v770
        %v772 = vpop.f32.mrf.mxu0
        %773 = vmatprep.mubr.f32.mxu0 0.0
        %774 = vmatmul.mubr.f32.gmra.mxu0 %v641
        %v775 = vpop.f32.mrf.mxu0
        %v776 = vadd.f32 %v620, %v775
        %v777 = vpop.f32.mrf.mxu0
        %778 = vmatprep.mubr.f32.mxu0 0.0
        %779 = vmatmul.mubr.f32.gmra.mxu0 %v644
        %v780 = vpop.f32.mrf.mxu0
        %v781 = vadd.f32 %v620, %v780
        %v782 = vpop.f32.mrf.mxu0
        %783 = vmatprep.mubr.f32.mxu0 0.0
        %784 = vmatmul.mubr.f32.gmra.mxu0 %v647
        %v785 = vpop.f32.mrf.mxu0
        %v786 = vadd.f32 %v620, %v785
        %v787 = vpop.f32.mrf.mxu0
        %788 = vmatprep.mubr.f32.mxu0 0.0
        %789 = vmatmul.mubr.f32.gmra.mxu0 %v650
        %v790 = vpop.f32.mrf.mxu0
        %v791 = vadd.f32 %v620, %v790
        %v792 = vpop.f32.mrf.mxu0
        %793 = vmatprep.mubr.f32.mxu0 0.0
        %794 = vmatmul.mubr.f32.gmra.mxu0 %v653
        %v795 = vpop.f32.mrf.mxu0
        %v796 = vadd.f32 %v620, %v795
        %v797 = vpop.f32.mrf.mxu0
        %798 = vmatprep.mubr.f32.mxu0 0.0
        %799 = vmatmul.mubr.f32.gmra.mxu0 %v656
        %v800 = vpop.f32.mrf.mxu0
        %v801 = vadd.f32 %v620, %v800
        %v802 = vpop.f32.mrf.mxu0
        %803 = vmatprep.mubr.f32.mxu0 0.0
        %804 = vmatmul.mubr.f32.gmra.mxu0 %v659
        %v805 = vpop.f32.mrf.mxu0
        %v806 = vadd.f32 %v620, %v805
        %v807 = vpop.f32.mrf.mxu0
        %808 = vmatprep.mubr.f32.mxu0 0.0
        %809 = vmatmul.mubr.f32.gmra.mxu0 %v662
        %v810 = vpop.f32.mrf.mxu0
        %v811 = vadd.f32 %v620, %v810
        %v812 = vpop.f32.mrf.mxu0
        %813 = vmatprep.mubr.f32.mxu0 0.0
        %814 = vmatmul.mubr.f32.gmra.mxu0 %v665
        %v815 = vpop.f32.mrf.mxu0
        %v816 = vadd.f32 %v620, %v815
        %v817 = vpop.f32.mrf.mxu0
        %818 = vmatprep.mubr.f32.mxu0 0.0
        %819 = vmatmul.mubr.f32.gmra.mxu0 %v668
        %v820 = vpop.f32.mrf.mxu0
        %v821 = vadd.f32 %v620, %v820
        %v822 = vpop.f32.mrf.mxu0
        %823 = vmatprep.mubr.f32.mxu0 0.0
        %824 = vmatmul.mubr.f32.gmra.mxu0 %v671
        %v825 = vpop.f32.mrf.mxu0
        %v826 = vadd.f32 %v620, %v825
        %v827 = vpop.f32.mrf.mxu0
        %828 = vmatprep.mubr.f32.mxu0 0.0
        %829 = vmatmul.mubr.f32.gmra.mxu0 %v674
        %v830 = vpop.f32.mrf.mxu0
        %v831 = vadd.f32 %v620, %v830
        %v832 = vpop.f32.mrf.mxu0
        %833 = vdwg.mxu0
        %v834 = vmul.f32 %v746, 0.5
        %v835 = vmul.f32 %v751, 0.5
        %v836 = vmul.f32 %v756, 0.5
        %v837 = vmul.f32 %v761, 0.5
        %v838 = vmul.f32 %v766, 0.5
        %v839 = vmul.f32 %v771, 0.5
        %v840 = vmul.f32 %v776, 0.5
        %v841 = vmul.f32 %v781, 0.5
        %v842 = vmul.f32 %v786, 0.5
        %v843 = vmul.f32 %v791, 0.5
        %v844 = vmul.f32 %v796, 0.5
        %v845 = vmul.f32 %v801, 0.5
        %v846 = vmul.f32 %v806, 0.5
        %v847 = vmul.f32 %v811, 0.5
        %v848 = vmul.f32 %v816, 0.5
        %v849 = vmul.f32 %v821, 0.5
        %v850 = vmul.f32 %v826, 0.5
        %v851 = vmul.f32 %v831, 0.5
        %v852 = vtanh.pop %v834
        %v853 = vtanh.pop %v835
        %v854 = vtanh.pop %v836
        %v855 = vtanh.pop %v837
        %v856 = vtanh.pop %v838
        %v857 = vtanh.pop %v839
        %v858 = vtanh.pop %v840
        %v859 = vtanh.pop %v841
        %v860 = vtanh.pop %v842
        %v861 = vtanh.pop %v843
        %v862 = vtanh.pop %v844
        %v863 = vtanh.pop %v845
        %v864 = vtanh.pop %v846
        %v865 = vtanh.pop %v847
        %v866 = vtanh.pop %v848
        %v867 = vtanh.pop %v849
        %v868 = vtanh.pop %v850
        %v869 = vtanh.pop %v851
        %v870 = vmul.f32 %v852, 0.5
        %v871 = vmul.f32 %v853, 0.5
        %v872 = vmul.f32 %v854, 0.5
        %v873 = vmul.f32 %v855, 0.5
        %v874 = vmul.f32 %v856, 0.5
        %v875 = vmul.f32 %v857, 0.5
        %v876 = vmul.f32 %v858, 0.5
        %v877 = vmul.f32 %v859, 0.5
        %v878 = vmul.f32 %v860, 0.5
        %v879 = vmul.f32 %v861, 0.5
        %v880 = vmul.f32 %v862, 0.5
        %v881 = vmul.f32 %v863, 0.5
        %v882 = vmul.f32 %v864, 0.5
        %v883 = vmul.f32 %v865, 0.5
        %v884 = vmul.f32 %v866, 0.5
        %v885 = vmul.f32 %v867, 0.5
        %v886 = vmul.f32 %v868, 0.5
        %v887 = vmul.f32 %v869, 0.5
        %v888 = vadd.f32 %v870, 0.5
        %v889 = vadd.f32 %v871, 0.5
        %v890 = vadd.f32 %v872, 0.5
        %v891 = vadd.f32 %v873, 0.5
        %v892 = vadd.f32 %v874, 0.5
        %v893 = vadd.f32 %v875, 0.5
        %v894 = vadd.f32 %v876, 0.5
        %v895 = vadd.f32 %v877, 0.5
        %v896 = vadd.f32 %v878, 0.5
        %v897 = vadd.f32 %v879, 0.5
        %v898 = vadd.f32 %v880, 0.5
        %v899 = vadd.f32 %v881, 0.5
        %v900 = vadd.f32 %v882, 0.5
        %v901 = vadd.f32 %v883, 0.5
        %v902 = vadd.f32 %v884, 0.5
        %v903 = vadd.f32 %v885, 0.5
        %v904 = vadd.f32 %v886, 0.5
        %v905 = vadd.f32 %v887, 0.5
        %v906 = vmul.f32 %v746, %v888
        %v907 = vmul.f32 %v751, %v889
        %v908 = vmul.f32 %v756, %v890
        %v909 = vmul.f32 %v761, %v891
        %v910 = vmul.f32 %v766, %v892
        %v911 = vmul.f32 %v771, %v893
        %v912 = vmul.f32 %v776, %v894
        %v913 = vmul.f32 %v781, %v895
        %v914 = vmul.f32 %v786, %v896
        %v915 = vmul.f32 %v791, %v897
        %v916 = vmul.f32 %v796, %v898
        %v917 = vmul.f32 %v801, %v899
        %v918 = vmul.f32 %v806, %v900
        %v919 = vmul.f32 %v811, %v901
        %v920 = vmul.f32 %v816, %v902
        %v921 = vmul.f32 %v821, %v903
        %v922 = vmul.f32 %v826, %v904
        %v923 = vmul.f32 %v831, %v905
        %p924 = scmp.gt.s32.totalorder %s27, 0
        %s925 = scalar_select %p924, 1, 0
        %s926 = scvt.s32.f32 %s925
        %v927 = vstv %s926
        %v928 = vmul.f32 %v922, %v927
        %v929 = vmul.f32 %v923, %v927
        %v934 = vrot.slane %v910, 7
        %v935 = vrot.slane %v911, 7
        %v936 = vrot.slane %v912, 7
        %v937 = vrot.slane %v913, 7
        %vm942 = vcmask 1040384
        %v943 = vsel %vm942, 0.0, %v934
        %v944 = vsel %vm942, 0.0, %v935
        %v945 = vsel %vm942, 0.0, %v936
        %v946 = vsel %vm942, 0.0, %v937
        %v952 = vrot.slane %v929, 7
        %v953 = vrot.slane %v918, 7
        %v954 = vrot.slane %v919, 7
        %v955 = vrot.slane %v920, 7
        %v956 = vrot.slane %v921, 7
        %v962 = vsel %vm942, 0.0, %v952
        %v963 = vsel %vm942, 0.0, %v953
        %v964 = vsel %vm942, 0.0, %v954
        %v965 = vsel %vm942, 0.0, %v955
        %v966 = vsel %vm942, 0.0, %v956
        %971 = vrot.lane.b32.xlu0 %v928, 4
        %v972 = vpop.permute.xlu0 %971
        %973 = vrot.lane.b32.xlu0 %v914, 4
        %v974 = vpop.permute.xlu0 %973
        %975 = vrot.lane.b32.xlu0 %v915, 4
        %v976 = vpop.permute.xlu0 %975
        %977 = vrot.lane.b32.xlu0 %v916, 4
        %v978 = vpop.permute.xlu0 %977
        %983 = vrot.lane.b32.xlu0 %v929, 8
        %v984 = vpop.permute.xlu0 %983
        %985 = vrot.lane.b32.xlu0 %v918, 8
        %v986 = vpop.permute.xlu0 %985
        %987 = vrot.lane.b32.xlu0 %v919, 8
        %v988 = vpop.permute.xlu0 %987
        %989 = vrot.lane.b32.xlu0 %v920, 8
        %v990 = vpop.permute.xlu0 %989
        %999 = vrot.lane.b32.xlu0 %v943, 12
        %v1000 = vpop.permute.xlu0 %999
        %1001 = vrot.lane.b32.xlu0 %v944, 12
        %v1002 = vpop.permute.xlu0 %1001
        %1003 = vrot.lane.b32.xlu0 %v945, 12
        %v1004 = vpop.permute.xlu0 %1003
        %1005 = vrot.lane.b32.xlu0 %v946, 12
        %v1006 = vpop.permute.xlu0 %1005
        %1015 = vrot.lane.b32.xlu0 %v906, 16
        %v1016 = vpop.permute.xlu0 %1015
        %1017 = vrot.lane.b32.xlu0 %v907, 16
        %v1018 = vpop.permute.xlu0 %1017
        %1019 = vrot.lane.b32.xlu0 %v908, 16
        %v1020 = vpop.permute.xlu0 %1019
        %1021 = vrot.lane.b32.xlu0 %v909, 16
        %v1022 = vpop.permute.xlu0 %1021
        %1027 = vrot.lane.b32.xlu0 %v910, 20
        %v1028 = vpop.permute.xlu0 %1027
        %1029 = vrot.lane.b32.xlu0 %v911, 20
        %v1030 = vpop.permute.xlu0 %1029
        %1031 = vrot.lane.b32.xlu0 %v912, 20
        %v1032 = vpop.permute.xlu0 %1031
        %1033 = vrot.lane.b32.xlu0 %v913, 20
        %v1034 = vpop.permute.xlu0 %1033
        %1043 = vrot.lane.b32.xlu0 %v963, 24
        %v1044 = vpop.permute.xlu0 %1043
        %1045 = vrot.lane.b32.xlu0 %v964, 24
        %v1046 = vpop.permute.xlu0 %1045
        %1047 = vrot.lane.b32.xlu0 %v965, 24
        %v1048 = vpop.permute.xlu0 %1047
        %1049 = vrot.lane.b32.xlu0 %v966, 24
        %v1050 = vpop.permute.xlu0 %1049
        %1056 = vrot.lane.b32.xlu0 %v914, 28
        %v1057 = vpop.permute.xlu0 %1056
        %1058 = vrot.lane.b32.xlu0 %v915, 28
        %v1059 = vpop.permute.xlu0 %1058
        %1060 = vrot.lane.b32.xlu0 %v916, 28
        %v1061 = vpop.permute.xlu0 %1060
        %1062 = vrot.lane.b32.xlu0 %v917, 28
        %v1063 = vpop.permute.xlu0 %1062
        %1068 = vrot.lane.b32.xlu0 %v918, 32
        %v1069 = vpop.permute.xlu0 %1068
        %1070 = vrot.lane.b32.xlu0 %v919, 32
        %v1071 = vpop.permute.xlu0 %1070
        %1072 = vrot.lane.b32.xlu0 %v920, 32
        %v1073 = vpop.permute.xlu0 %1072
        %1074 = vrot.lane.b32.xlu0 %v921, 32
        %v1075 = vpop.permute.xlu0 %1074
        %v1080 = vsel %vm492, %v962, %v972
        %v1081 = vsel %vm492, %v963, %v974
        %v1082 = vsel %vm492, %v964, %v976
        %v1083 = vsel %vm492, %v965, %v978
        %vm1084 = vcmask 64512
        %v1085 = vsel %vm1084, %v1080, %v984
        %v1086 = vsel %vm1084, %v1081, %v986
        %v1087 = vsel %vm1084, %v1082, %v988
        %v1088 = vsel %vm1084, %v1083, %v990
        %vm1089 = vcmask 97280
        %v1090 = vsel %vm1089, %v1085, %v1000
        %v1091 = vsel %vm1089, %v1086, %v1002
        %v1092 = vsel %vm1089, %v1087, %v1004
        %v1093 = vsel %vm1089, %v1088, %v1006
        %vm1094 = vcmask 130048
        %v1095 = vsel %vm1094, %v1090, %v1016
        %v1096 = vsel %vm1094, %v1091, %v1018
        %v1097 = vsel %vm1094, %v1092, %v1020
        %v1098 = vsel %vm1094, %v1093, %v1022
        %vm1099 = vcmask 162816
        %v1100 = vsel %vm1099, %v1095, %v1028
        %v1101 = vsel %vm1099, %v1096, %v1030
        %v1102 = vsel %vm1099, %v1097, %v1032
        %v1103 = vsel %vm1099, %v1098, %v1034
        %vm1104 = vcmask 195584
        %v1105 = vsel %vm1104, %v1100, %v1044
        %v1106 = vsel %vm1104, %v1101, %v1046
        %v1107 = vsel %vm1104, %v1102, %v1048
        %v1108 = vsel %vm1104, %v1103, %v1050
        %vm1109 = vcmask 228352
        %v1110 = vsel %vm1109, %v1105, %v1057
        %v1111 = vsel %vm1109, %v1106, %v1059
        %v1112 = vsel %vm1109, %v1107, %v1061
        %v1113 = vsel %vm1109, %v1108, %v1063
        %vm1114 = vcmask 261120
        %v1115 = vsel %vm1114, %v1110, %v1069
        %v1116 = vsel %vm1114, %v1111, %v1071
        %v1117 = vsel %vm1114, %v1112, %v1073
        %v1118 = vsel %vm1114, %v1113, %v1075
        %v1119 = vld [vmem:[%s6] sm:$0xff]
        %v1120 = vld [vmem:[%s6 + $0x8] sm:$0xff]
        %v1121 = vld [vmem:[%s6 + $0x10] sm:$0xff]
        %v1122 = vld [vmem:[%s6 + $0x18] sm:$0xff]
        %v1123 = vld [vmem:[%s6 + $0x20] sm:$0xf]
        %v1124 = vld [vmem:[%s7] sm:$0x1]
        %v1126 = vlaneseq
        %v1127 = vshrl.u32 %v1126, 7
        %v1128 = vsub.s32 0, %v1127
        %v1129 = vrot.slane %v1124, %v1128
        %vm1131 = vcmask 293888
        %v1133 = vsel %vm1131, %v1115, 0
        %v1136 = vsel %vm1131, %v1116, 0
        %v1139 = vsel %vm1131, %v1117, 0
        %v1142 = vsel %vm1131, %v1118, 0
        %v1145 = vsel %vm505, %v1123, 0
        %1147 = vmatprep.subr.mxu0 0.0
        %1148 = vmatpush1.msra.mxu0 0.0
        %1149 = vmatprep.subr.mxu0 0.0
        %1150 = vmatpush1.msra.mxu0 0.0
        %1151 = vmatprep.subr.mxu0 0.0
        %1152 = vmatpush1.msra.mxu0 0.0
        %1153 = vmatprep.subr.mxu0 0.0
        %1154 = vmatpush1.msra.mxu0 0.0
        %1155 = vmatprep.subr.mxu0 0.0
        %1156 = vmatpush1.msra.mxu0 0.0
        %1157 = vmatprep.subr.mxu0 0.0
        %1158 = vmatpush1.msra.mxu0 0.0
        %1159 = vmatprep.subr.mxu0 0.0
        %1160 = vmatpush1.msra.mxu0 0.0
        %1161 = vmatprep.subr.mxu0 0.0
        %1162 = vmatpush1.msra.mxu0 0.0
        %1163 = vmatprep.subr.mxu0 0.0
        %1164 = vmatpush1.msra.mxu0 0.0
        %1165 = vmatprep.subr.mxu0 0.0
        %1166 = vmatpush1.msra.mxu0 0.0
        %1167 = vmatprep.subr.mxu0 0.0
        %1168 = vmatpush1.msra.mxu0 0.0
        %1169 = vmatprep.subr.mxu0 0.0
        %1170 = vmatpush1.msra.mxu0 %v1145
        %1171 = vmatprep.subr.mxu0 0.0
        %1172 = vmatpush1.msra.mxu0 %v1122
        %1173 = vmatprep.subr.mxu0 0.0
        %1174 = vmatpush1.msra.mxu0 %v1121
        %1175 = vmatprep.subr.mxu0 0.0
        %1176 = vmatpush1.msra.mxu0 %v1120
        %1177 = vmatprep.subr.mxu0 0.0
        %1178 = vmatpush1.msra.mxu0 %v1119
        %1179 = vmatprep.subr.mxu0 0.0
        %1180 = vmatpush2.msra.mxu0 0.0
        %1181 = vmatprep.subr.mxu0 0.0
        %1182 = vmatpush2.msra.mxu0 0.0
        %1183 = vmatprep.subr.mxu0 0.0
        %1184 = vmatpush2.msra.mxu0 0.0
        %1185 = vmatprep.subr.mxu0 0.0
        %1186 = vmatpush2.msra.mxu0 0.0
        %1187 = vmatprep.subr.mxu0 0.0
        %1188 = vmatpush2.msra.mxu0 0.0
        %1189 = vmatprep.subr.mxu0 0.0
        %1190 = vmatpush2.msra.mxu0 0.0
        %1191 = vmatprep.subr.mxu0 0.0
        %1192 = vmatpush2.msra.mxu0 0.0
        %1193 = vmatprep.subr.mxu0 0.0
        %1194 = vmatpush2.msra.mxu0 0.0
        %1195 = vmatprep.subr.mxu0 0.0
        %1196 = vmatpush2.msra.mxu0 0.0
        %1197 = vmatprep.subr.mxu0 0.0
        %1198 = vmatpush2.msra.mxu0 0.0
        %1199 = vmatprep.subr.mxu0 0.0
        %1200 = vmatpush2.msra.mxu0 0.0
        %1201 = vmatprep.subr.mxu0 0.0
        %1202 = vmatpush2.msra.mxu0 0.0
        %1203 = vmatprep.subr.mxu0 0.0
        %1204 = vmatpush2.msra.mxu0 0.0
        %1205 = vmatprep.subr.mxu0 0.0
        %1206 = vmatpush2.msra.mxu0 0.0
        %1207 = vmatprep.subr.mxu0 0.0
        %1208 = vmatpush2.msra.mxu0 0.0
        %1209 = vmatprep.subr.mxu0 0.0
        %1210 = vmatpush2.msra.mxu0 0.0
        %1211 = vmatprep.mubr.f32.mxu0 0.0
        %1212 = vmatmul.mubr.f32.gmra.mxu0 %v1133
        %v1213 = vpop.f32.mrf.mxu0
        %v1214 = vadd.f32 %v1129, %v1213
        %v1215 = vpop.f32.mrf.mxu0
        %1216 = vmatprep.mubr.f32.mxu0 0.0
        %1217 = vmatmul.mubr.f32.gmra.mxu0 %v1136
        %v1218 = vpop.f32.mrf.mxu0
        %v1219 = vadd.f32 %v1129, %v1218
        %v1220 = vpop.f32.mrf.mxu0
        %1221 = vmatprep.mubr.f32.mxu0 0.0
        %1222 = vmatmul.mubr.f32.gmra.mxu0 %v1139
        %v1223 = vpop.f32.mrf.mxu0
        %v1224 = vadd.f32 %v1129, %v1223
        %v1225 = vpop.f32.mrf.mxu0
        %1226 = vmatprep.mubr.f32.mxu0 0.0
        %1227 = vmatmul.mubr.f32.gmra.mxu0 %v1142
        %v1228 = vpop.f32.mrf.mxu0
        %v1229 = vadd.f32 %v1129, %v1228
        %v1230 = vpop.f32.mrf.mxu0
        %1231 = vdwg.mxu0
        %v1232 = vmul.f32 %v1214, 0.5
        %v1233 = vmul.f32 %v1219, 0.5
        %v1234 = vmul.f32 %v1224, 0.5
        %v1235 = vmul.f32 %v1229, 0.5
        %v1236 = vtanh.pop %v1232
        %v1237 = vtanh.pop %v1233
        %v1238 = vtanh.pop %v1234
        %v1239 = vtanh.pop %v1235
        %v1240 = vmul.f32 %v1236, 0.5
        %v1241 = vmul.f32 %v1237, 0.5
        %v1242 = vmul.f32 %v1238, 0.5
        %v1243 = vmul.f32 %v1239, 0.5
        %v1244 = vadd.f32 %v1240, 0.5
        %v1245 = vadd.f32 %v1241, 0.5
        %v1246 = vadd.f32 %v1242, 0.5
        %v1247 = vadd.f32 %v1243, 0.5
        %v1248 = vmul.f32 %v1214, %v1244
        %v1249 = vmul.f32 %v1219, %v1245
        %v1250 = vmul.f32 %v1224, %v1246
        %v1251 = vmul.f32 %v1229, %v1247
        %1256 = vrot.lane.b32.xlu0 %v1248, 4
        %v1257 = vpop.permute.xlu0 %1256
        %1258 = vrot.lane.b32.xlu0 %v1249, 4
        %v1259 = vpop.permute.xlu0 %1258
        %1260 = vrot.lane.b32.xlu0 %v1250, 4
        %v1261 = vpop.permute.xlu0 %1260
        %1262 = vrot.lane.b32.xlu0 %v1251, 4
        %v1263 = vpop.permute.xlu0 %1262
        %v1268 = vsel %vm492, %v610, %v1257
        %v1269 = vsel %vm492, %v611, %v1259
        %v1270 = vsel %vm492, %v612, %v1261
        %v1271 = vsel %vm492, %v613, %v1263
        %1272 = vst.msk [vmem:[%s442] sm:$0xff] %vm1084, %v1268
        %1273 = vst.msk [vmem:[%s442 + $0x8] sm:$0xff] %vm1084, %v1269
        %1274 = vst.msk [vmem:[%s442 + $0x10] sm:$0xff] %vm1084, %v1270
        %1275 = vst.msk [vmem:[%s442 + $0x18] sm:$0xff] %vm1084, %v1271
        %s1276 = sand.u32 %s226, 1
        %s1277 = scalar_lea.sflag [#allocation4], %s1276
        %s1278 = sand.u32 %s226, 1
        %s1279 = smul.addr %s1278, 32
        %s1280 = scalar_lea.vmem [#allocation3], %s1279
        // Predicated region
        $region91: #{tpu_custom_call.1} parent=85 // pred_check
          %p1281 = pneg %p236
        $region92: #{tpu_custom_call.1} parent=85 // pred_check_branch
          %1283 = sbr.rel (%p1281) target = $region94
        $region93: #{tpu_custom_call.1} parent=85 // pred_region
          %s1284 = smul.u32 4, %s27
          %s1286 = ssub.s32 512, 512
          %1287 = vsyncadd %s1277, %s1286
          %s1288 = smul.addr %s26, 8
          %s1289 = sadd.s32 %s1284, %s1288
          %s1290 = smul.addr %s1289, 128
          %s1291 = scalar_lea.hbm %s8, %s1290
          %s1292 = sshll.u32 %s1280, 4
          %s1293 = int_to_ptr.vmem [resolvable:$true] %s1292
          %1298 = dma.vmem_to_hbm [thread:$0]  %s1293, 512, %s1291, %s1277, 128, 128, 8
        $region94: #{tpu_custom_call.1} parent=85 // pred_fallthru
          _
      $region86: #{tpu_custom_call.1} parent=5 // pred_fallthru
        _
      %p1299 = scmp.le.s32.totalorder 2, %s17
      // Predicated region
      $region95: #{tpu_custom_call.1} parent=5 // pred_check
        %p1300 = pneg %p1299
      $region96: #{tpu_custom_call.1} parent=5 // pred_check_branch
        %1302 = sbr.rel (%p1300) target = $region98
      $region97: #{tpu_custom_call.1} parent=5 // pred_region
        %s1303 = ssub.s32 %s17, 2
        // Predicated region
        $region99: #{tpu_custom_call.1} parent=97 // pred_check
          %p1304 = pneg %p242
        $region100: #{tpu_custom_call.1} parent=97 // pred_check_branch
          %1306 = sbr.rel (%p1304) target = $region102
        $region101: #{tpu_custom_call.1} parent=97 // pred_region
          %s1307 = sand.u32 %s227, 1
          %s1308 = scalar_lea.sflag [#allocation4], %s1307
          %s1309 = sand.u32 %s227, 1
          %s1310 = smul.addr %s1309, 32
          %s1311 = scalar_lea.vmem [#allocation3], %s1310
          %1312 = dma.done %s1308, 512
        $region102: #{tpu_custom_call.1} parent=97 // pred_fallthru
          _
      $region98: #{tpu_custom_call.1} parent=5 // pred_fallthru
        _
    $region6: #{tpu_custom_call.1} parent=1 // loop_footer
      %s21 = sadd.s32 1, %s17
    $region7: #{tpu_custom_call.1} parent=1 // loop_footer_branch
      %16 = sbr.rel target = $region3
    $region8: #{tpu_custom_call.1} parent=1 // loop_exit
      _
    %1313 = vsyncpa [#allocation4], 1
    %s1314 = scalar_lea.sflag [#allocation4], 1
    %1315 = vsyncpa %s1314, 1

</llo_original>
